<compile_context>
chip_gen: v6e
topology: v6e:2x2x1
jax: 0.10.0
libtpu: 0.0.40
codegen_flags: <defaults>
</compile_context>

<pallas_src>
import jax
import jax.numpy as jnp
from jax.experimental import pallas as pl
from jax.experimental.pallas import tpu as pltpu


LANE = 128  # TPU vreg lane width


def _round_up(v, m):
    return (v + m - 1) // m * m


def _elu(v):
    # ELU(alpha=1). Clamp the dead branch so exp() of large positive v never overflows.
    # TODO(synk): jnp.expm1 would be bit-closer to PyTorch for tiny |v|.
    return jnp.where(v > 0.0, v, jnp.exp(jnp.minimum(v, 0.0)) - 1.0)


# ----------------------------- Pallas kernel ------------------------------ #
def gin_fused_kernel(eps_ref, adj_ref, x_ref,
                     w1_ref, b1_ref, w2_ref, b2_ref, w3_ref, b3_ref,
                     out_ref):
    """All GIN layers in one call. Grid axis 0 = layer index (sequential).

    adj / x are VMEM-resident across layers (constant block index); out_ref is the
    resident carry buffer holding the current node features.
    """
    l = pl.program_id(0)

    @pl.when(l == 0)
    def _():
        out_ref[...] = x_ref[...]          # seed the carry with the input features

    x = out_ref[...]                        # (N_pad, H_pad) current features
    eps = eps_ref[l]                        # scalar from SMEM

    # Neighbor sum aggregation: A @ x (MXU).
    agg = jnp.dot(adj_ref[...], x, preferred_element_type=jnp.float32)

    # GIN combine.
    h = (1.0 + eps) * x + agg

    # MLP([1,2,3,1], hidden_dim) with ELU after every Linear (padded lane-dense dims).
    h = _elu(jnp.dot(h, w1_ref[...], preferred_element_type=jnp.float32) + b1_ref[...])
    h = _elu(jnp.dot(h, w2_ref[...], preferred_element_type=jnp.float32) + b2_ref[...])
    h = _elu(jnp.dot(h, w3_ref[...], preferred_element_type=jnp.float32) + b3_ref[...])

    # Outer ELU from Graph_encoder.forward; Dropout is identity in eval mode.
    # TODO(synk): training-mode dropout would need pltpu.prng_seed/prng_random_bits.
    out_ref[...] = _elu(h)


# ----------------------------- Parameter setup ---------------------------- #
def init_linear(key, fan_in, fan_out):
    """PyTorch-Linear-style init; weight stored as (in, out)."""
    kw, kb = jax.random.split(key)
    bound = 1.0 / jnp.sqrt(jnp.float32(fan_in))
    w = jax.random.uniform(kw, (fan_in, fan_out), jnp.float32, -bound, bound)
    b = jax.random.uniform(kb, (1, fan_out), jnp.float32, -bound, bound)
    return w, b


def init_graph_encoder_params(key, gat_layers_num, hidden_dim):
    """Stacked, zero-padded (lane-dense) parameters for the fused kernel."""
    dims = [hidden_dim, 2 * hidden_dim, 3 * hidden_dim, hidden_dim]
    dims_pad = [_round_up(d, LANE) for d in dims]

    ws = [[], [], []]
    bs = [[], [], []]
    for _ in range(gat_layers_num):
        for i in range(3):
            key, sub = jax.random.split(key)
            w, b = init_linear(sub, dims[i], dims[i + 1])
            w_pad = jnp.zeros((dims_pad[i], dims_pad[i + 1]), jnp.float32)
            w_pad = w_pad.at[:dims[i], :dims[i + 1]].set(w)
            b_pad = jnp.zeros((1, dims_pad[i + 1]), jnp.float32)
            b_pad = b_pad.at[:, :dims[i + 1]].set(b)
            ws[i].append(w_pad)
            bs[i].append(b_pad)

    return {
        "eps": jnp.zeros((gat_layers_num,), jnp.float32),       # train_eps init = 0.0
        "w": [jnp.stack(ws[i]) for i in range(3)],               # (L, Din_pad, Dout_pad)
        "b": [jnp.stack(bs[i]) for i in range(3)],               # (L, 1, Dout_pad)
    }


# ----------------------------- Full forward -------------------------------- #
def graph_encoder_forward(x, edge_index, params):
    """x: (N, hidden_dim) f32; edge_index: (2, E) int32 (row0=src, row1=dst)."""
    N, H = x.shape
    L = int(params["eps"].shape[0])
    H_pad = params["w"][0].shape[1]
    D1_pad = params["w"][0].shape[2]
    D2_pad = params["w"][1].shape[2]
    N_pad = _round_up(N, LANE)   # lane-dense adjacency last dim + aligned sublanes

    # Dense adjacency A[dst, src] (counts multi-edges) — plain-JAX glue.
    src, dst = edge_index[0], edge_index[1]
    adj = jnp.zeros((N_pad, N_pad), jnp.float32).at[dst, src].add(1.0)

    x_pad = jnp.zeros((N_pad, H_pad), jnp.float32).at[:N, :H].set(x)

    grid_spec = pltpu.PrefetchScalarGridSpec(
        num_scalar_prefetch=0,
        grid=(L,),
        in_specs=[
            pl.BlockSpec(memory_space=pltpu.MemorySpace.SMEM),         # eps (L,)
            pl.BlockSpec((N_pad, N_pad), lambda l: (0, 0)),            # adj (resident)
            pl.BlockSpec((N_pad, H_pad), lambda l: (0, 0)),            # x (fetched once)
            pl.BlockSpec((None, H_pad, D1_pad), lambda l: (l, 0, 0)),  # w1[l]
            pl.BlockSpec((None, 1, D1_pad), lambda l: (l, 0, 0)),      # b1[l]
            pl.BlockSpec((None, D1_pad, D2_pad), lambda l: (l, 0, 0)), # w2[l]
            pl.BlockSpec((None, 1, D2_pad), lambda l: (l, 0, 0)),      # b2[l]
            pl.BlockSpec((None, D2_pad, H_pad), lambda l: (l, 0, 0)),  # w3[l]
            pl.BlockSpec((None, 1, H_pad), lambda l: (l, 0, 0)),       # b3[l]
        ],
        out_specs=pl.BlockSpec((N_pad, H_pad), lambda l: (0, 0)),      # resident carry
    )

    out_pad = pl.pallas_call(
        gin_fused_kernel,
        out_shape=jax.ShapeDtypeStruct((N_pad, H_pad), jnp.float32),
        grid_spec=grid_spec,
        compiler_params=pltpu.CompilerParams(
            dimension_semantics=("arbitrary",),       # layers are sequential
            vmem_limit_bytes=32 * 1024 * 1024,
        ),
    )(params["eps"], adj, x_pad,
      params["w"][0], params["b"][0],
      params["w"][1], params["b"][1],
      params["w"][2], params["b"][2])

    return out_pad[:N, :H]


# --------------------------------- Main ------------------------------------ #
if __name__ == "__main__":
    N = 16            # number of graph nodes
    HIDDEN_DIM = 32
    GAT_LAYERS_NUM = 2
    E = 32            # number of edges

    key = jax.random.PRNGKey(0)
    k_x, k_e, k_p = jax.random.split(key, 3)

    x = jax.random.normal(k_x, (N, HIDDEN_DIM), jnp.float32)
    edge_index = jax.random.randint(k_e, (2, E), 0, N, jnp.int32)

    params = init_graph_encoder_params(k_p, GAT_LAYERS_NUM, HIDDEN_DIM)

    out = graph_encoder_forward(x, edge_index, params)
    jax.block_until_ready(out)
    assert out.shape == (N, HIDDEN_DIM)
    print("KERNEL_OK")
</pallas_src>

<mosaic_0001>
module attributes {stable_mosaic.version = 11 : i64} {
  func.func @gin_fused_kernel(%arg0: i32, %arg1: memref<2xf32, #tpu.memory_space<smem>>, %arg2: memref<128x128xf32, #tpu.memory_space<vmem>>, %arg3: memref<128x128xf32, #tpu.memory_space<vmem>>, %arg4: memref<1x128x128xf32, #tpu.memory_space<vmem>>, %arg5: memref<1x1x128xf32, #tpu.memory_space<vmem>>, %arg6: memref<1x128x128xf32, #tpu.memory_space<vmem>>, %arg7: memref<1x1x128xf32, #tpu.memory_space<vmem>>, %arg8: memref<1x128x128xf32, #tpu.memory_space<vmem>>, %arg9: memref<1x1x128xf32, #tpu.memory_space<vmem>>, %arg10: memref<128x128xf32, #tpu.memory_space<vmem>>) attributes {dimension_semantics = [#tpu.dimension_semantics<arbitrary>], iteration_bounds = array<i64: 2>, scalar_prefetch = 0 : i64, scratch_operands = 0 : i64, tpu.core_type = #tpu.core_type<tc>, window_params = [{transform_indices = @transform_0, window_bounds = array<i64: 2>}, {pipeline_mode = #tpu.pipeline_mode<synchronous>, transform_indices = @transform_1, window_bounds = array<i64: 128, 128>}, {pipeline_mode = #tpu.pipeline_mode<synchronous>, transform_indices = @transform_2, window_bounds = array<i64: 128, 128>}, {transform_indices = @transform_3, window_bounds = array<i64: 1, 128, 128>}, {transform_indices = @transform_4, window_bounds = array<i64: 1, 1, 128>}, {transform_indices = @transform_5, window_bounds = array<i64: 1, 128, 128>}, {transform_indices = @transform_6, window_bounds = array<i64: 1, 1, 128>}, {transform_indices = @transform_7, window_bounds = array<i64: 1, 128, 128>}, {transform_indices = @transform_8, window_bounds = array<i64: 1, 1, 128>}, {pipeline_mode = #tpu.pipeline_mode<synchronous>, transform_indices = @transform_9, window_bounds = array<i64: 128, 128>}]} {
    %c0_i32 = arith.constant 0 : i32
    %0 = arith.cmpi eq, %arg0, %c0_i32 : i32
    %1 = arith.extui %0 : i1 to i32
    %c0_i32_0 = arith.constant 0 : i32
    %2 = arith.cmpi ne, %1, %c0_i32_0 : i32
    scf.if %2 {
      %c0_40 = arith.constant 0 : index
      %c0_41 = arith.constant 0 : index
      %66 = vector.load %arg3[%c0_40, %c0_41] : memref<128x128xf32, #tpu.memory_space<vmem>>, vector<128x128xf32>
      %c0_42 = arith.constant 0 : index
      %c0_43 = arith.constant 0 : index
      %67 = vector.load %arg10[%c0_42, %c0_43] : memref<128x128xf32, #tpu.memory_space<vmem>>, vector<128x128xf32>
      tpu.vector_store %arg10[%c0_42, %c0_43], %66 {strides = array<i32>} : memref<128x128xf32, #tpu.memory_space<vmem>>, vector<128x128xf32>,
    } else {
    }
    %c0 = arith.constant 0 : index
    %c0_1 = arith.constant 0 : index
    %3 = vector.load %arg10[%c0, %c0_1] : memref<128x128xf32, #tpu.memory_space<vmem>>, vector<128x128xf32>
    %4 = arith.index_cast %arg0 : i32 to index
    %5 = memref.load %arg1[%4] : memref<2xf32, #tpu.memory_space<smem>>
    %c0_2 = arith.constant 0 : index
    %c0_3 = arith.constant 0 : index
    %6 = vector.load %arg2[%c0_2, %c0_3] : memref<128x128xf32, #tpu.memory_space<vmem>>, vector<128x128xf32>
    %cst = arith.constant dense<0.000000e+00> : vector<128x128xf32>
    %7 = tpu.matmul %6, %3, %cst {dimension_numbers = #tpu.dot_dimension_numbers<[1], [0], [0], [1], [0, 0, 1, 1], [], []>} : vector<128x128xf32>, vector<128x128xf32>, vector<128x128xf32> -> vector<128x128xf32>
    %cst_4 = arith.constant 1.000000e+00 : f32
    %8 = arith.addf %cst_4, %5 : f32
    %9 = vector.broadcast %8 : f32 to vector<128x128xf32>
    %10 = arith.mulf %9, %3 : vector<128x128xf32>
    %11 = arith.addf %10, %7 : vector<128x128xf32>
    %c0_5 = arith.constant 0 : index
    %c0_6 = arith.constant 0 : index
    %c0_7 = arith.constant 0 : index
    %12 = vector.load %arg4[%c0_5, %c0_6, %c0_7] : memref<1x128x128xf32, #tpu.memory_space<vmem>>, vector<1x128x128xf32>
    %13 = vector.shape_cast %12 : vector<1x128x128xf32> to vector<128x128xf32>
    %cst_8 = arith.constant dense<0.000000e+00> : vector<128x128xf32>
    %14 = tpu.matmul %11, %13, %cst_8 {dimension_numbers = #tpu.dot_dimension_numbers<[1], [0], [0], [1], [0, 0, 1, 1], [], []>} : vector<128x128xf32>, vector<128x128xf32>, vector<128x128xf32> -> vector<128x128xf32>
    %c0_9 = arith.constant 0 : index
    %c0_10 = arith.constant 0 : index
    %c0_11 = arith.constant 0 : index
    %15 = vector.load %arg5[%c0_9, %c0_10, %c0_11] : memref<1x1x128xf32, #tpu.memory_space<vmem>>, vector<1x1x128xf32>
    %16 = vector.shape_cast %15 : vector<1x1x128xf32> to vector<1x128xf32>
    %17 = vector.broadcast %16 : vector<1x128xf32> to vector<128x128xf32>
    %18 = arith.addf %14, %17 : vector<128x128xf32>
    %cst_12 = arith.constant 0.000000e+00 : f32
    %19 = vector.broadcast %cst_12 : f32 to vector<128x128xf32>
    %20 = arith.cmpf ogt, %18, %19 : vector<128x128xf32>
    %cst_13 = arith.constant 0.000000e+00 : f32
    %21 = vector.broadcast %cst_13 : f32 to vector<128x128xf32>
    %22 = arith.minimumf %18, %21 : vector<128x128xf32>
    %23 = math.exp %22 : vector<128x128xf32>
    %cst_14 = arith.constant 1.000000e+00 : f32
    %24 = vector.broadcast %cst_14 : f32 to vector<128x128xf32>
    %25 = arith.subf %23, %24 : vector<128x128xf32>
    %26 = arith.select %20, %18, %25 : vector<128x128xi1>, vector<128x128xf32>
    %c0_15 = arith.constant 0 : index
    %c0_16 = arith.constant 0 : index
    %c0_17 = arith.constant 0 : index
    %27 = vector.load %arg6[%c0_15, %c0_16, %c0_17] : memref<1x128x128xf32, #tpu.memory_space<vmem>>, vector<1x128x128xf32>
    %28 = vector.shape_cast %27 : vector<1x128x128xf32> to vector<128x128xf32>
    %cst_18 = arith.constant dense<0.000000e+00> : vector<128x128xf32>
    %29 = tpu.matmul %26, %28, %cst_18 {dimension_numbers = #tpu.dot_dimension_numbers<[1], [0], [0], [1], [0, 0, 1, 1], [], []>} : vector<128x128xf32>, vector<128x128xf32>, vector<128x128xf32> -> vector<128x128xf32>
    %c0_19 = arith.constant 0 : index
    %c0_20 = arith.constant 0 : index
    %c0_21 = arith.constant 0 : index
    %30 = vector.load %arg7[%c0_19, %c0_20, %c0_21] : memref<1x1x128xf32, #tpu.memory_space<vmem>>, vector<1x1x128xf32>
    %31 = vector.shape_cast %30 : vector<1x1x128xf32> to vector<1x128xf32>
    %32 = vector.broadcast %31 : vector<1x128xf32> to vector<128x128xf32>
    %33 = arith.addf %29, %32 : vector<128x128xf32>
    %cst_22 = arith.constant 0.000000e+00 : f32
    %34 = vector.broadcast %cst_22 : f32 to vector<128x128xf32>
    %35 = arith.cmpf ogt, %33, %34 : vector<128x128xf32>
    %cst_23 = arith.constant 0.000000e+00 : f32
    %36 = vector.broadcast %cst_23 : f32 to vector<128x128xf32>
    %37 = arith.minimumf %33, %36 : vector<128x128xf32>
    %38 = math.exp %37 : vector<128x128xf32>
    %cst_24 = arith.constant 1.000000e+00 : f32
    %39 = vector.broadcast %cst_24 : f32 to vector<128x128xf32>
    %40 = arith.subf %38, %39 : vector<128x128xf32>
    %41 = arith.select %35, %33, %40 : vector<128x128xi1>, vector<128x128xf32>
    %c0_25 = arith.constant 0 : index
    %c0_26 = arith.constant 0 : index
    %c0_27 = arith.constant 0 : index
    %42 = vector.load %arg8[%c0_25, %c0_26, %c0_27] : memref<1x128x128xf32, #tpu.memory_space<vmem>>, vector<1x128x128xf32>
    %43 = vector.shape_cast %42 : vector<1x128x128xf32> to vector<128x128xf32>
    %cst_28 = arith.constant dense<0.000000e+00> : vector<128x128xf32>
    %44 = tpu.matmul %41, %43, %cst_28 {dimension_numbers = #tpu.dot_dimension_numbers<[1], [0], [0], [1], [0, 0, 1, 1], [], []>} : vector<128x128xf32>, vector<128x128xf32>, vector<128x128xf32> -> vector<128x128xf32>
    %c0_29 = arith.constant 0 : index
    %c0_30 = arith.constant 0 : index
    %c0_31 = arith.constant 0 : index
    %45 = vector.load %arg9[%c0_29, %c0_30, %c0_31] : memref<1x1x128xf32, #tpu.memory_space<vmem>>, vector<1x1x128xf32>
    %46 = vector.shape_cast %45 : vector<1x1x128xf32> to vector<1x128xf32>
    %47 = vector.broadcast %46 : vector<1x128xf32> to vector<128x128xf32>
    %48 = arith.addf %44, %47 : vector<128x128xf32>
    %cst_32 = arith.constant 0.000000e+00 : f32
    %49 = vector.broadcast %cst_32 : f32 to vector<128x128xf32>
    %50 = arith.cmpf ogt, %48, %49 : vector<128x128xf32>
    %cst_33 = arith.constant 0.000000e+00 : f32
    %51 = vector.broadcast %cst_33 : f32 to vector<128x128xf32>
    %52 = arith.minimumf %48, %51 : vector<128x128xf32>
    %53 = math.exp %52 : vector<128x128xf32>
    %cst_34 = arith.constant 1.000000e+00 : f32
    %54 = vector.broadcast %cst_34 : f32 to vector<128x128xf32>
    %55 = arith.subf %53, %54 : vector<128x128xf32>
    %56 = arith.select %50, %48, %55 : vector<128x128xi1>, vector<128x128xf32>
    %cst_35 = arith.constant 0.000000e+00 : f32
    %57 = vector.broadcast %cst_35 : f32 to vector<128x128xf32>
    %58 = arith.cmpf ogt, %56, %57 : vector<128x128xf32>
    %cst_36 = arith.constant 0.000000e+00 : f32
    %59 = vector.broadcast %cst_36 : f32 to vector<128x128xf32>
    %60 = arith.minimumf %56, %59 : vector<128x128xf32>
    %61 = math.exp %60 : vector<128x128xf32>
    %cst_37 = arith.constant 1.000000e+00 : f32
    %62 = vector.broadcast %cst_37 : f32 to vector<128x128xf32>
    %63 = arith.subf %61, %62 : vector<128x128xf32>
    %64 = arith.select %58, %56, %63 : vector<128x128xi1>, vector<128x128xf32>
    %c0_38 = arith.constant 0 : index
    %c0_39 = arith.constant 0 : index
    %65 = vector.load %arg10[%c0_38, %c0_39] : memref<128x128xf32, #tpu.memory_space<vmem>>, vector<128x128xf32>
    tpu.vector_store %arg10[%c0_38, %c0_39], %64 {strides = array<i32>} : memref<128x128xf32, #tpu.memory_space<vmem>>, vector<128x128xf32>,
    return
  }
  func.func @transform_0(%arg0: i32) -> i32 {
    %c0_i32 = arith.constant 0 : i32
    %c0_i32_0 = arith.constant 0 : i32
    return %c0_i32 : i32
  }
  func.func @transform_1(%arg0: i32) -> (i32, i32) {
    %c0_i32 = arith.constant 0 : i32
    %c0_i32_0 = arith.constant 0 : i32
    %c0_i32_1 = arith.constant 0 : i32
    return %c0_i32, %c0_i32_0 : i32, i32
  }
  func.func @transform_2(%arg0: i32) -> (i32, i32) {
    %c0_i32 = arith.constant 0 : i32
    %c0_i32_0 = arith.constant 0 : i32
    %c0_i32_1 = arith.constant 0 : i32
    return %c0_i32, %c0_i32_0 : i32, i32
  }
  func.func @transform_3(%arg0: i32) -> (i32, i32, i32) {
    %c0_i32 = arith.constant 0 : i32
    %c0_i32_0 = arith.constant 0 : i32
    %c0_i32_1 = arith.constant 0 : i32
    return %arg0, %c0_i32, %c0_i32_0 : i32, i32, i32
  }
  func.func @transform_4(%arg0: i32) -> (i32, i32, i32) {
    %c0_i32 = arith.constant 0 : i32
    %c0_i32_0 = arith.constant 0 : i32
    %c0_i32_1 = arith.constant 0 : i32
    return %arg0, %c0_i32, %c0_i32_0 : i32, i32, i32
  }
  func.func @transform_5(%arg0: i32) -> (i32, i32, i32) {
    %c0_i32 = arith.constant 0 : i32
    %c0_i32_0 = arith.constant 0 : i32
    %c0_i32_1 = arith.constant 0 : i32
    return %arg0, %c0_i32, %c0_i32_0 : i32, i32, i32
  }
  func.func @transform_6(%arg0: i32) -> (i32, i32, i32) {
    %c0_i32 = arith.constant 0 : i32
    %c0_i32_0 = arith.constant 0 : i32
    %c0_i32_1 = arith.constant 0 : i32
    return %arg0, %c0_i32, %c0_i32_0 : i32, i32, i32
  }
  func.func @transform_7(%arg0: i32) -> (i32, i32, i32) {
    %c0_i32 = arith.constant 0 : i32
    %c0_i32_0 = arith.constant 0 : i32
    %c0_i32_1 = arith.constant 0 : i32
    return %arg0, %c0_i32, %c0_i32_0 : i32, i32, i32
  }
  func.func @transform_8(%arg0: i32) -> (i32, i32, i32) {
    %c0_i32 = arith.constant 0 : i32
    %c0_i32_0 = arith.constant 0 : i32
    %c0_i32_1 = arith.constant 0 : i32
    return %arg0, %c0_i32, %c0_i32_0 : i32, i32, i32
  }
  func.func @transform_9(%arg0: i32) -> (i32, i32) {
    %c0_i32 = arith.constant 0 : i32
    %c0_i32_0 = arith.constant 0 : i32
    %c0_i32_1 = arith.constant 0 : i32
    return %c0_i32, %c0_i32_0 : i32, i32
  }
}

</mosaic_0001>

<llo_original>
// kernel: tpu_custom_call.1
$region0: #{tpu_custom_call.1}
  #allocation0 [shape = 'u32[]', space=smem, size = 0x4, offset = 0x4, fixed_abs, tag = 'smem constant byte address 0x4 - core index']
  #allocation1 [shape = 'u32[144,128]{1,0:T(1,128)}', space=vmem, size = 0x12000, scoped, tag = 'internal scratch']
  %s0 = inlined_call_operand.hbm [shape: f32[2], index: 0, kind: input, shape index: {}]
  %s1 = inlined_call_operand.hbm [shape: f32[128,128], index: 1, kind: input, shape index: {}]
  %s2 = inlined_call_operand.hbm [shape: f32[128,128], index: 2, kind: input, shape index: {}]
  %s3 = inlined_call_operand.hbm [shape: f32[2,128,128], index: 3, kind: input, shape index: {}]
  %s4 = inlined_call_operand.vmem [shape: f32[2,1,128], index: 4, kind: input, shape index: {}]
  %s5 = inlined_call_operand.hbm [shape: f32[2,128,128], index: 5, kind: input, shape index: {}]
  %s6 = inlined_call_operand.vmem [shape: f32[2,1,128], index: 6, kind: input, shape index: {}]
  %s7 = inlined_call_operand.hbm [shape: f32[2,128,128], index: 7, kind: input, shape index: {}]
  %s8 = inlined_call_operand.vmem [shape: f32[2,1,128], index: 8, kind: input, shape index: {}]
  %s9 = inlined_call_operand.hbm [shape: f32[128,128], index: 9, kind: output, shape index: {}]
  %s10 = sld [smem:[#allocation0]]
  $region97: #{tpu_custom_call.1} parent=0
    _
  %s12 = ssub.s32 1, %s10
  %s13 = scalar_select 0, %s12, %s10
  $region1: #{tpu_custom_call.1} parent=0
    #allocation2 [shape = 'u8[512]{0}', space=smem, size = 0x200, scoped, tag = 'input window, operand 0, single buffered']
    #allocation3 [shape = 's32[2]{0}', space=sflag, size = 0x8, scoped, tag = 'scoped memory for tpu_custom_call.1']
    #allocation4 [shape = 's32[2]{0}', space=sflag, size = 0x8, scoped, tag = 'scoped memory for tpu_custom_call.1']
    #allocation5 [shape = 's32[2]{0}', space=sflag, size = 0x8, scoped, tag = 'scoped memory for tpu_custom_call.1']
    #allocation6 [shape = 'u8[65536]{0}', space=vmem, size = 0x10000, scoped, tag = 'input window, operand 1, single buffered']
    #allocation7 [shape = 'u8[65536]{0}', space=vmem, size = 0x10000, scoped, tag = 'input window, operand 2, single buffered']
    #allocation8 [shape = 's32[1]{0}', space=sflag, size = 0x4, scoped, tag = 'scoped memory for tpu_custom_call.1']
    #allocation9 [shape = 'u8[131072]{0}', space=vmem, size = 0x20000, scoped, tag = 'input window, operand 3']
    #allocation10 [shape = 'u8[131072]{0}', space=vmem, size = 0x20000, scoped, tag = 'input window, operand 5']
    #allocation11 [shape = 'u8[131072]{0}', space=vmem, size = 0x20000, scoped, tag = 'input window, operand 7']
    #allocation12 [shape = 'u8[65536]{0}', space=vmem, size = 0x10000, scoped, tag = 'output window, operand 0, single buffered']
    %14 = vsyncpa [#allocation5], 0
    %15 = vsyncpa [#allocation3], 0
    %16 = vsyncpa [#allocation8], 0
    %17 = vsyncpa [#allocation4], 0
    loop: start=0, step=1, limit=4
    $region2: #{tpu_custom_call.1} parent=1 // loop_pre_header
      _
    $region3: #{tpu_custom_call.1} parent=1 // loop_header
      %s19 = sphi 0, %s23
      %p20 = scmp.ge.s32.totalorder %s19, 4
      %s27 = sphi 0, %s27
      %s29 = sphi 0, %s27
      %s30 = sphi 0, %s29
      %s44 = sphi 0, %s30
      %s48 = sphi 0, %s48
      %s50 = sphi 0, %s48
      %s51 = sphi 0, %s50
      %s65 = sphi 0, %s51
      %s69 = sphi 0, %s69
      %s71 = sphi 0, %s69
      %s72 = sphi 0, %s71
      %s86 = sphi 0, %s72
      %s92 = sphi 0, %s94
      %s95 = sphi 0, %s92
      %s96 = sphi 0, %s95
      %s112 = sphi 0, %s96
      %s118 = sphi 0, %s120
      %s121 = sphi 0, %s118
      %s122 = sphi 0, %s121
      %s138 = sphi 0, %s122
      %s144 = sphi 0, %s146
      %s147 = sphi 0, %s144
      %s148 = sphi 0, %s147
      %s164 = sphi 0, %s148
      %s170 = sphi 0, %s172
      %s173 = sphi 0, %s170
      %s174 = sphi 0, %s173
      %s190 = sphi 0, %s174
      %s196 = sphi 0, %s198
      %s199 = sphi 0, %s196
      %s200 = sphi 0, %s199
      %s216 = sphi 0, %s200
      %s222 = sphi 0, %s224
      %s225 = sphi 0, %s222
      %s226 = sphi 0, %s225
      %s242 = sphi 0, %s226
      %s246 = sphi 0, %s246
      %s248 = sphi 0, %s246
      %s249 = sphi 0, %s248
      %s263 = sphi 0, %s249
    $region4: #{tpu_custom_call.1} parent=1 // loop_header_branch
      %22 = sbr.rel (%p20) target = $region8
    $region5: #{tpu_custom_call.1} parent=1 // loop_body
      %s24 = ssub.s32 %s19, 1
      %s25 = ssub.s32 %s19, 2
      %s26 = sadd.s32 %s19, 1
      %s28 = sadd.s32 %s27, 1
      %p31 = scmp.eq.s32.totalorder %s19, 1
      %p32 = scmp.ne.s32.totalorder %s27, %s29
      %p33 = scmp.eq.s32.totalorder %s19, 0
      %p34 = por %p32, %p33
      %p35 = scmp.ne.s32.totalorder %s27, %s29
      %p36 = scmp.eq.s32.totalorder %s24, 1
      %p37 = por %p35, %p36
      %p38 = scmp.ne.s32.totalorder %s29, %s30
      %p39 = scmp.eq.s32.totalorder %s24, 0
      %p40 = por %p38, %p39
      %p41 = scmp.ne.s32.totalorder %s29, %s30
      %p42 = scmp.eq.s32.totalorder %s25, 1
      %p43 = por %p41, %p42
      %p45 = scmp.ne.s32.totalorder %s30, %s44
      %p46 = scmp.eq.s32.totalorder %s25, 0
      %p47 = por %p45, %p46
      %s49 = sadd.s32 %s48, 1
      %p52 = scmp.eq.s32.totalorder %s19, 1
      %p53 = scmp.ne.s32.totalorder %s48, %s50
      %p54 = scmp.eq.s32.totalorder %s19, 0
      %p55 = por %p53, %p54
      %p56 = scmp.ne.s32.totalorder %s48, %s50
      %p57 = scmp.eq.s32.totalorder %s24, 1
      %p58 = por %p56, %p57
      %p59 = scmp.ne.s32.totalorder %s50, %s51
      %p60 = scmp.eq.s32.totalorder %s24, 0
      %p61 = por %p59, %p60
      %p62 = scmp.ne.s32.totalorder %s50, %s51
      %p63 = scmp.eq.s32.totalorder %s25, 1
      %p64 = por %p62, %p63
      %p66 = scmp.ne.s32.totalorder %s51, %s65
      %p67 = scmp.eq.s32.totalorder %s25, 0
      %p68 = por %p66, %p67
      %s70 = sadd.s32 %s69, 1
      %p73 = scmp.eq.s32.totalorder %s19, 1
      %p74 = scmp.ne.s32.totalorder %s69, %s71
      %p75 = scmp.eq.s32.totalorder %s19, 0
      %p76 = por %p74, %p75
      %p77 = scmp.ne.s32.totalorder %s69, %s71
      %p78 = scmp.eq.s32.totalorder %s24, 1
      %p79 = por %p77, %p78
      %p80 = scmp.ne.s32.totalorder %s71, %s72
      %p81 = scmp.eq.s32.totalorder %s24, 0
      %p82 = por %p80, %p81
      %p83 = scmp.ne.s32.totalorder %s71, %s72
      %p84 = scmp.eq.s32.totalorder %s25, 1
      %p85 = por %p83, %p84
      %p87 = scmp.ne.s32.totalorder %s72, %s86
      %p88 = scmp.eq.s32.totalorder %s25, 0
      %p89 = por %p87, %p88
      %s90 = ssub.s32 %s19, %s26
      %p91 = scmp.eq.s32.totalorder %s90, 0
      %s93 = sadd.s32 %s92, 1
      %s94 = scalar_select %p91, %s92, %s93
      %p97 = pneg %p91
      %p98 = scmp.eq.s32.totalorder %s19, 1
      %p99 = por %p97, %p98
      %p100 = scmp.ne.s32.totalorder %s92, %s95
      %p101 = scmp.eq.s32.totalorder %s19, 0
      %p102 = por %p100, %p101
      %p103 = scmp.ne.s32.totalorder %s92, %s95
      %p104 = scmp.eq.s32.totalorder %s24, 1
      %p105 = por %p103, %p104
      %p106 = scmp.ne.s32.totalorder %s95, %s96
      %p107 = scmp.eq.s32.totalorder %s24, 0
      %p108 = por %p106, %p107
      %p109 = scmp.ne.s32.totalorder %s95, %s96
      %p110 = scmp.eq.s32.totalorder %s25, 1
      %p111 = por %p109, %p110
      %p113 = scmp.ne.s32.totalorder %s96, %s112
      %p114 = scmp.eq.s32.totalorder %s25, 0
      %p115 = por %p113, %p114
      %s116 = ssub.s32 %s19, %s26
      %p117 = scmp.eq.s32.totalorder %s116, 0
      %s119 = sadd.s32 %s118, 1
      %s120 = scalar_select %p117, %s118, %s119
      %p123 = pneg %p117
      %p124 = scmp.eq.s32.totalorder %s19, 1
      %p125 = por %p123, %p124
      %p126 = scmp.ne.s32.totalorder %s118, %s121
      %p127 = scmp.eq.s32.totalorder %s19, 0
      %p128 = por %p126, %p127
      %p129 = scmp.ne.s32.totalorder %s118, %s121
      %p130 = scmp.eq.s32.totalorder %s24, 1
      %p131 = por %p129, %p130
      %p132 = scmp.ne.s32.totalorder %s121, %s122
      %p133 = scmp.eq.s32.totalorder %s24, 0
      %p134 = por %p132, %p133
      %p135 = scmp.ne.s32.totalorder %s121, %s122
      %p136 = scmp.eq.s32.totalorder %s25, 1
      %p137 = por %p135, %p136
      %p139 = scmp.ne.s32.totalorder %s122, %s138
      %p140 = scmp.eq.s32.totalorder %s25, 0
      %p141 = por %p139, %p140
      %s142 = ssub.s32 %s19, %s26
      %p143 = scmp.eq.s32.totalorder %s142, 0
      %s145 = sadd.s32 %s144, 1
      %s146 = scalar_select %p143, %s144, %s145
      %p149 = pneg %p143
      %p150 = scmp.eq.s32.totalorder %s19, 1
      %p151 = por %p149, %p150
      %p152 = scmp.ne.s32.totalorder %s144, %s147
      %p153 = scmp.eq.s32.totalorder %s19, 0
      %p154 = por %p152, %p153
      %p155 = scmp.ne.s32.totalorder %s144, %s147
      %p156 = scmp.eq.s32.totalorder %s24, 1
      %p157 = por %p155, %p156
      %p158 = scmp.ne.s32.totalorder %s147, %s148
      %p159 = scmp.eq.s32.totalorder %s24, 0
      %p160 = por %p158, %p159
      %p161 = scmp.ne.s32.totalorder %s147, %s148
      %p162 = scmp.eq.s32.totalorder %s25, 1
      %p163 = por %p161, %p162
      %p165 = scmp.ne.s32.totalorder %s148, %s164
      %p166 = scmp.eq.s32.totalorder %s25, 0
      %p167 = por %p165, %p166
      %s168 = ssub.s32 %s19, %s26
      %p169 = scmp.eq.s32.totalorder %s168, 0
      %s171 = sadd.s32 %s170, 1
      %s172 = scalar_select %p169, %s170, %s171
      %p175 = pneg %p169
      %p176 = scmp.eq.s32.totalorder %s19, 1
      %p177 = por %p175, %p176
      %p178 = scmp.ne.s32.totalorder %s170, %s173
      %p179 = scmp.eq.s32.totalorder %s19, 0
      %p180 = por %p178, %p179
      %p181 = scmp.ne.s32.totalorder %s170, %s173
      %p182 = scmp.eq.s32.totalorder %s24, 1
      %p183 = por %p181, %p182
      %p184 = scmp.ne.s32.totalorder %s173, %s174
      %p185 = scmp.eq.s32.totalorder %s24, 0
      %p186 = por %p184, %p185
      %p187 = scmp.ne.s32.totalorder %s173, %s174
      %p188 = scmp.eq.s32.totalorder %s25, 1
      %p189 = por %p187, %p188
      %p191 = scmp.ne.s32.totalorder %s174, %s190
      %p192 = scmp.eq.s32.totalorder %s25, 0
      %p193 = por %p191, %p192
      %s194 = ssub.s32 %s19, %s26
      %p195 = scmp.eq.s32.totalorder %s194, 0
      %s197 = sadd.s32 %s196, 1
      %s198 = scalar_select %p195, %s196, %s197
      %p201 = pneg %p195
      %p202 = scmp.eq.s32.totalorder %s19, 1
      %p203 = por %p201, %p202
      %p204 = scmp.ne.s32.totalorder %s196, %s199
      %p205 = scmp.eq.s32.totalorder %s19, 0
      %p206 = por %p204, %p205
      %p207 = scmp.ne.s32.totalorder %s196, %s199
      %p208 = scmp.eq.s32.totalorder %s24, 1
      %p209 = por %p207, %p208
      %p210 = scmp.ne.s32.totalorder %s199, %s200
      %p211 = scmp.eq.s32.totalorder %s24, 0
      %p212 = por %p210, %p211
      %p213 = scmp.ne.s32.totalorder %s199, %s200
      %p214 = scmp.eq.s32.totalorder %s25, 1
      %p215 = por %p213, %p214
      %p217 = scmp.ne.s32.totalorder %s200, %s216
      %p218 = scmp.eq.s32.totalorder %s25, 0
      %p219 = por %p217, %p218
      %s220 = ssub.s32 %s19, %s26
      %p221 = scmp.eq.s32.totalorder %s220, 0
      %s223 = sadd.s32 %s222, 1
      %s224 = scalar_select %p221, %s222, %s223
      %p227 = pneg %p221
      %p228 = scmp.eq.s32.totalorder %s19, 1
      %p229 = por %p227, %p228
      %p230 = scmp.ne.s32.totalorder %s222, %s225
      %p231 = scmp.eq.s32.totalorder %s19, 0
      %p232 = por %p230, %p231
      %p233 = scmp.ne.s32.totalorder %s222, %s225
      %p234 = scmp.eq.s32.totalorder %s24, 1
      %p235 = por %p233, %p234
      %p236 = scmp.ne.s32.totalorder %s225, %s226
      %p237 = scmp.eq.s32.totalorder %s24, 0
      %p238 = por %p236, %p237
      %p239 = scmp.ne.s32.totalorder %s225, %s226
      %p240 = scmp.eq.s32.totalorder %s25, 1
      %p241 = por %p239, %p240
      %p243 = scmp.ne.s32.totalorder %s226, %s242
      %p244 = scmp.eq.s32.totalorder %s25, 0
      %p245 = por %p243, %p244
      %s247 = sadd.s32 %s246, 1
      %p250 = scmp.eq.s32.totalorder %s19, 1
      %p251 = scmp.ne.s32.totalorder %s246, %s248
      %p252 = scmp.eq.s32.totalorder %s19, 0
      %p253 = por %p251, %p252
      %p254 = scmp.ne.s32.totalorder %s246, %s248
      %p255 = scmp.eq.s32.totalorder %s24, 1
      %p256 = por %p254, %p255
      %p257 = scmp.ne.s32.totalorder %s248, %s249
      %p258 = scmp.eq.s32.totalorder %s24, 0
      %p259 = por %p257, %p258
      %p260 = scmp.ne.s32.totalorder %s248, %s249
      %p261 = scmp.eq.s32.totalorder %s25, 1
      %p262 = por %p260, %p261
      %p264 = scmp.ne.s32.totalorder %s249, %s263
      %p265 = scmp.eq.s32.totalorder %s25, 0
      %p266 = por %p264, %p265
      %p267 = scmp.le.s32.totalorder 1, %s19
      %p268 = scmp.lt.s32.totalorder %s19, 3
      %p269 = pnand %p267, %p268
      %p270 = pneg %p269
      // Predicated region
      $region9: #{tpu_custom_call.1} parent=5 // pred_check
        _
      $region10: #{tpu_custom_call.1} parent=5 // pred_check_branch
        %272 = sbr.rel (%p269) target = $region12
      $region11: #{tpu_custom_call.1} parent=5 // pred_region
        %s273 = ssub.s32 %s19, 1
        // Predicated region
        $region13: #{tpu_custom_call.1} parent=11 // pred_check
          %p274 = pneg %p40
        $region14: #{tpu_custom_call.1} parent=11 // pred_check_branch
          %276 = sbr.rel (%p274) target = $region16
        $region15: #{tpu_custom_call.1} parent=11 // pred_region
          %s278 = ssub.s32 16, 16
          %279 = vsyncadd [#allocation5], %s278
          %282 = dma.hbm_to_smem %s0, 16, [#allocation2], [#allocation5]
        $region16: #{tpu_custom_call.1} parent=11 // pred_fallthru
          _
        // Predicated region
        $region17: #{tpu_custom_call.1} parent=11 // pred_check
          %p283 = pneg %p61
        $region18: #{tpu_custom_call.1} parent=11 // pred_check_branch
          %285 = sbr.rel (%p283) target = $region20
        $region19: #{tpu_custom_call.1} parent=11 // pred_region
          %s287 = ssub.s32 2048, 2048
          %288 = vsyncadd [#allocation3], %s287
          %s289 = sshll.u32 [#allocation6], 4
          %s290 = int_to_ptr.vmem [resolvable:$true] %s289
          %295 = dma.hbm_to_vmem [thread:$0]  %s1, 2048, %s290, [#allocation3], 128, 128, 8
        $region20: #{tpu_custom_call.1} parent=11 // pred_fallthru
          _
        // Predicated region
        $region21: #{tpu_custom_call.1} parent=11 // pred_check
          %p296 = pneg %p82
        $region22: #{tpu_custom_call.1} parent=11 // pred_check_branch
          %298 = sbr.rel (%p296) target = $region24
        $region23: #{tpu_custom_call.1} parent=11 // pred_region
          %s300 = ssub.s32 2048, 2048
          %301 = vsyncadd [#allocation8], %s300
          %s302 = sshll.u32 [#allocation7], 4
          %s303 = int_to_ptr.vmem [resolvable:$true] %s302
          %308 = dma.hbm_to_vmem [thread:$0]  %s2, 2048, %s303, [#allocation8], 128, 128, 8
        $region24: #{tpu_custom_call.1} parent=11 // pred_fallthru
          _
      $region12: #{tpu_custom_call.1} parent=5 // pred_fallthru
        _
      %p309 = scmp.lt.s32.totalorder %s19, 2
      // Predicated region
      $region25: #{tpu_custom_call.1} parent=5 // pred_check
        %p310 = pneg %p309
      $region26: #{tpu_custom_call.1} parent=5 // pred_check_branch
        %312 = sbr.rel (%p310) target = $region28
      $region27: #{tpu_custom_call.1} parent=5 // pred_region
        // Predicated region
        $region29: #{tpu_custom_call.1} parent=27 // pred_check
          %p313 = pneg %p102
        $region30: #{tpu_custom_call.1} parent=27 // pred_check_branch
          %315 = sbr.rel (%p313) target = $region32
        $region31: #{tpu_custom_call.1} parent=27 // pred_region
          %s316 = sand.u32 %s19, 1
          %s317 = scalar_lea.sflag [#allocation3], %s316
          %s318 = sand.u32 %s92, 1
          %s319 = smul.addr %s318, 128
          %s320 = scalar_lea.vmem [#allocation9], %s319
          %s322 = ssub.s32 2048, 2048
          %323 = vsyncadd %s317, %s322
          %s324 = smul.addr %s19, 16
          %s325 = smul.addr %s324, 128
          %s326 = scalar_lea.hbm %s3, %s325
          %s327 = sshll.u32 %s320, 4
          %s328 = int_to_ptr.vmem [resolvable:$true] %s327
          %333 = dma.hbm_to_vmem [thread:$0]  %s326, 2048, %s328, %s317, 128, 128, 8
        $region32: #{tpu_custom_call.1} parent=27 // pred_fallthru
          _
        // Predicated region
        $region33: #{tpu_custom_call.1} parent=27 // pred_check
          %p334 = pneg %p128
        $region34: #{tpu_custom_call.1} parent=27 // pred_check_branch
          %336 = sbr.rel (%p334) target = $region36
        $region35: #{tpu_custom_call.1} parent=27 // pred_region
          %p337 = scmp.lt.s32.totalorder %s19, 1
          %s338 = scalar_select %p337, %s19, 1
          %s339 = scalar_lea.vmem %s4, %s338
        $region36: #{tpu_custom_call.1} parent=27 // pred_fallthru
          _
        // Predicated region
        $region37: #{tpu_custom_call.1} parent=27 // pred_check
          %p340 = pneg %p154
        $region38: #{tpu_custom_call.1} parent=27 // pred_check_branch
          %342 = sbr.rel (%p340) target = $region40
        $region39: #{tpu_custom_call.1} parent=27 // pred_region
          %s343 = sand.u32 %s19, 1
          %s344 = scalar_lea.sflag [#allocation3], %s343
          %s345 = sand.u32 %s144, 1
          %s346 = smul.addr %s345, 128
          %s347 = scalar_lea.vmem [#allocation10], %s346
          %s349 = ssub.s32 2048, 2048
          %350 = vsyncadd %s344, %s349
          %s351 = smul.addr %s19, 16
          %s352 = smul.addr %s351, 128
          %s353 = scalar_lea.hbm %s5, %s352
          %s354 = sshll.u32 %s347, 4
          %s355 = int_to_ptr.vmem [resolvable:$true] %s354
          %360 = dma.hbm_to_vmem [thread:$0]  %s353, 2048, %s355, %s344, 128, 128, 8
        $region40: #{tpu_custom_call.1} parent=27 // pred_fallthru
          _
        // Predicated region
        $region41: #{tpu_custom_call.1} parent=27 // pred_check
          %p361 = pneg %p180
        $region42: #{tpu_custom_call.1} parent=27 // pred_check_branch
          %363 = sbr.rel (%p361) target = $region44
        $region43: #{tpu_custom_call.1} parent=27 // pred_region
          %p364 = scmp.lt.s32.totalorder %s19, 1
          %s365 = scalar_select %p364, %s19, 1
          %s366 = scalar_lea.vmem %s6, %s365
        $region44: #{tpu_custom_call.1} parent=27 // pred_fallthru
          _
        // Predicated region
        $region45: #{tpu_custom_call.1} parent=27 // pred_check
          %p367 = pneg %p206
        $region46: #{tpu_custom_call.1} parent=27 // pred_check_branch
          %369 = sbr.rel (%p367) target = $region48
        $region47: #{tpu_custom_call.1} parent=27 // pred_region
          %s370 = sand.u32 %s19, 1
          %s371 = scalar_lea.sflag [#allocation3], %s370
          %s372 = sand.u32 %s196, 1
          %s373 = smul.addr %s372, 128
          %s374 = scalar_lea.vmem [#allocation11], %s373
          %s376 = ssub.s32 2048, 2048
          %377 = vsyncadd %s371, %s376
          %s378 = smul.addr %s19, 16
          %s379 = smul.addr %s378, 128
          %s380 = scalar_lea.hbm %s7, %s379
          %s381 = sshll.u32 %s374, 4
          %s382 = int_to_ptr.vmem [resolvable:$true] %s381
          %387 = dma.hbm_to_vmem [thread:$0]  %s380, 2048, %s382, %s371, 128, 128, 8
        $region48: #{tpu_custom_call.1} parent=27 // pred_fallthru
          _
        // Predicated region
        $region49: #{tpu_custom_call.1} parent=27 // pred_check
          %p388 = pneg %p232
        $region50: #{tpu_custom_call.1} parent=27 // pred_check_branch
          %390 = sbr.rel (%p388) target = $region52
        $region51: #{tpu_custom_call.1} parent=27 // pred_region
          %p391 = scmp.lt.s32.totalorder %s19, 1
          %s392 = scalar_select %p391, %s19, 1
          %s393 = scalar_lea.vmem %s8, %s392
        $region52: #{tpu_custom_call.1} parent=27 // pred_fallthru
          _
      $region28: #{tpu_custom_call.1} parent=5 // pred_fallthru
        _
      %p394 = scmp.le.s32.totalorder 1, %s19
      %p395 = scmp.lt.s32.totalorder %s19, 3
      %p396 = pnand %p394, %p395
      %p397 = pneg %p396
      // Predicated region
      $region53: #{tpu_custom_call.1} parent=5 // pred_check
        _
      $region54: #{tpu_custom_call.1} parent=5 // pred_check_branch
        %399 = sbr.rel (%p396) target = $region56
      $region55: #{tpu_custom_call.1} parent=5 // pred_region
        %s400 = ssub.s32 %s19, 1
        // Predicated region
        $region57: #{tpu_custom_call.1} parent=55 // pred_check
          %p401 = pneg %p40
        $region58: #{tpu_custom_call.1} parent=55 // pred_check_branch
          %403 = sbr.rel (%p401) target = $region60
        $region59: #{tpu_custom_call.1} parent=55 // pred_region
          %404 = dma.done [#allocation5], 16
        $region60: #{tpu_custom_call.1} parent=55 // pred_fallthru
          _
        // Predicated region
        $region61: #{tpu_custom_call.1} parent=55 // pred_check
          %p405 = pneg %p61
        $region62: #{tpu_custom_call.1} parent=55 // pred_check_branch
          %407 = sbr.rel (%p405) target = $region64
        $region63: #{tpu_custom_call.1} parent=55 // pred_region
          %408 = dma.done [#allocation3], 2048
        $region64: #{tpu_custom_call.1} parent=55 // pred_fallthru
          _
        // Predicated region
        $region65: #{tpu_custom_call.1} parent=55 // pred_check
          %p409 = pneg %p82
        $region66: #{tpu_custom_call.1} parent=55 // pred_check_branch
          %411 = sbr.rel (%p409) target = $region68
        $region67: #{tpu_custom_call.1} parent=55 // pred_region
          %412 = dma.done [#allocation8], 2048
        $region68: #{tpu_custom_call.1} parent=55 // pred_fallthru
          _
        %s413 = sand.u32 %s24, 1
        %s414 = scalar_lea.sflag [#allocation3], %s413
        %s415 = sand.u32 %s95, 1
        %s416 = smul.addr %s415, 128
        %s417 = scalar_lea.vmem [#allocation9], %s416
        // Predicated region
        $region69: #{tpu_custom_call.1} parent=55 // pred_check
          %p418 = pneg %p108
        $region70: #{tpu_custom_call.1} parent=55 // pred_check_branch
          %420 = sbr.rel (%p418) target = $region72
        $region71: #{tpu_custom_call.1} parent=55 // pred_region
          %421 = dma.done %s414, 2048
        $region72: #{tpu_custom_call.1} parent=55 // pred_fallthru
          _
        %s422 = sand.u32 %s24, 1
        %s423 = scalar_lea.sflag [#allocation3], %s422
        %s424 = sand.u32 %s147, 1
        %s425 = smul.addr %s424, 128
        %s426 = scalar_lea.vmem [#allocation10], %s425
        // Predicated region
        $region73: #{tpu_custom_call.1} parent=55 // pred_check
          %p427 = pneg %p160
        $region74: #{tpu_custom_call.1} parent=55 // pred_check_branch
          %429 = sbr.rel (%p427) target = $region76
        $region75: #{tpu_custom_call.1} parent=55 // pred_region
          %430 = dma.done %s423, 2048
        $region76: #{tpu_custom_call.1} parent=55 // pred_fallthru
          _
        %s431 = sand.u32 %s24, 1
        %s432 = scalar_lea.sflag [#allocation3], %s431
        %s433 = sand.u32 %s199, 1
        %s434 = smul.addr %s433, 128
        %s435 = scalar_lea.vmem [#allocation11], %s434
        // Predicated region
        $region77: #{tpu_custom_call.1} parent=55 // pred_check
          %p436 = pneg %p212
        $region78: #{tpu_custom_call.1} parent=55 // pred_check_branch
          %438 = sbr.rel (%p436) target = $region80
        $region79: #{tpu_custom_call.1} parent=55 // pred_region
          %439 = dma.done %s432, 2048
        $region80: #{tpu_custom_call.1} parent=55 // pred_fallthru
          _
        %440 = sfence
        %p441 = pneg %p40
        %p442 = pneg %p37
        %p443 = pneg %p61
        %p444 = pneg %p58
        %p445 = pneg %p82
        %p446 = pneg %p79
        %s447 = sand.u32 %s24, 1
        %s448 = scalar_lea.sflag [#allocation3], %s447
        %s449 = sand.u32 %s95, 1
        %s450 = smul.addr %s449, 128
        %s451 = scalar_lea.vmem [#allocation9], %s450
        %p452 = pneg %p108
        %p453 = pneg %p105
        %p454 = scmp.lt.s32.totalorder %s24, 1
        %s455 = scalar_select %p454, %s24, 1
        %s456 = scalar_lea.vmem %s4, %s455
        %p457 = pneg %p134
        %p458 = pneg %p131
        %s459 = sand.u32 %s24, 1
        %s460 = scalar_lea.sflag [#allocation3], %s459
        %s461 = sand.u32 %s147, 1
        %s462 = smul.addr %s461, 128
        %s463 = scalar_lea.vmem [#allocation10], %s462
        %p464 = pneg %p160
        %p465 = pneg %p157
        %p466 = scmp.lt.s32.totalorder %s24, 1
        %s467 = scalar_select %p466, %s24, 1
        %s468 = scalar_lea.vmem %s6, %s467
        %p469 = pneg %p186
        %p470 = pneg %p183
        %s471 = sand.u32 %s24, 1
        %s472 = scalar_lea.sflag [#allocation3], %s471
        %s473 = sand.u32 %s199, 1
        %s474 = smul.addr %s473, 128
        %s475 = scalar_lea.vmem [#allocation11], %s474
        %p476 = pneg %p212
        %p477 = pneg %p209
        %p478 = scmp.lt.s32.totalorder %s24, 1
        %s479 = scalar_select %p478, %s24, 1
        %s480 = scalar_lea.vmem %s8, %s479
        %p481 = pneg %p238
        %p482 = pneg %p235
        %p483 = pneg %p259
        %p484 = pneg %p256
        %p485 = scmp.lt.s32.totalorder %s24, 1
        %s486 = scalar_select %p485, %s24, 1
        %s487 = scalar_lea.vmem %s4, %s486
        %p488 = scmp.lt.s32.totalorder %s24, 1
        %s489 = scalar_select %p488, %s24, 1
        %s490 = scalar_lea.vmem %s6, %s489
        %p491 = scmp.lt.s32.totalorder %s24, 1
        %s492 = scalar_select %p491, %s24, 1
        %s493 = scalar_lea.vmem %s8, %s492
        %p494 = scmp.eq.s32.totalorder %s24, 0
        // Predicated region
        $region81: #{tpu_custom_call.1} parent=55 // pred_check
          %p495 = pneg %p494
        $region82: #{tpu_custom_call.1} parent=55 // pred_check_branch
          %497 = sbr.rel (%p495) target = $region84
        $region83: #{tpu_custom_call.1} parent=55 // pred_region
          %v498 = vld [vmem:[#allocation7] sm:$0xff]
          %v499 = vld [vmem:[#allocation7 + $0x8] sm:$0xff]
          %v500 = vld [vmem:[#allocation7 + $0x10] sm:$0xff]
          %v501 = vld [vmem:[#allocation7 + $0x18] sm:$0xff]
          %v502 = vld [vmem:[#allocation7 + $0x20] sm:$0xff]
          %v503 = vld [vmem:[#allocation7 + $0x28] sm:$0xff]
          %v504 = vld [vmem:[#allocation7 + $0x30] sm:$0xff]
          %v505 = vld [vmem:[#allocation7 + $0x38] sm:$0xff]
          %v506 = vld [vmem:[#allocation7 + $0x40] sm:$0xff]
          %v507 = vld [vmem:[#allocation7 + $0x48] sm:$0xff]
          %v508 = vld [vmem:[#allocation7 + $0x50] sm:$0xff]
          %v509 = vld [vmem:[#allocation7 + $0x58] sm:$0xff]
          %v510 = vld [vmem:[#allocation7 + $0x60] sm:$0xff]
          %v511 = vld [vmem:[#allocation7 + $0x68] sm:$0xff]
          %v512 = vld [vmem:[#allocation7 + $0x70] sm:$0xff]
          %v513 = vld [vmem:[#allocation7 + $0x78] sm:$0xff]
          %514 = vst [vmem:[#allocation12] sm:$0xff] %v498
          %515 = vst [vmem:[#allocation12 + $0x8] sm:$0xff] %v499
          %516 = vst [vmem:[#allocation12 + $0x10] sm:$0xff] %v500
          %517 = vst [vmem:[#allocation12 + $0x18] sm:$0xff] %v501
          %518 = vst [vmem:[#allocation12 + $0x20] sm:$0xff] %v502
          %519 = vst [vmem:[#allocation12 + $0x28] sm:$0xff] %v503
          %520 = vst [vmem:[#allocation12 + $0x30] sm:$0xff] %v504
          %521 = vst [vmem:[#allocation12 + $0x38] sm:$0xff] %v505
          %522 = vst [vmem:[#allocation12 + $0x40] sm:$0xff] %v506
          %523 = vst [vmem:[#allocation12 + $0x48] sm:$0xff] %v507
          %524 = vst [vmem:[#allocation12 + $0x50] sm:$0xff] %v508
          %525 = vst [vmem:[#allocation12 + $0x58] sm:$0xff] %v509
          %526 = vst [vmem:[#allocation12 + $0x60] sm:$0xff] %v510
          %527 = vst [vmem:[#allocation12 + $0x68] sm:$0xff] %v511
          %528 = vst [vmem:[#allocation12 + $0x70] sm:$0xff] %v512
          %529 = vst [vmem:[#allocation12 + $0x78] sm:$0xff] %v513
        $region84: #{tpu_custom_call.1} parent=55 // pred_fallthru
          _
        %v530 = vld [vmem:[#allocation12] sm:$0xff]
        %v531 = vld [vmem:[#allocation12 + $0x8] sm:$0xff]
        %v532 = vld [vmem:[#allocation12 + $0x10] sm:$0xff]
        %v533 = vld [vmem:[#allocation12 + $0x18] sm:$0xff]
        %v534 = vld [vmem:[#allocation12 + $0x20] sm:$0xff]
        %v535 = vld [vmem:[#allocation12 + $0x28] sm:$0xff]
        %v536 = vld [vmem:[#allocation12 + $0x30] sm:$0xff]
        %v537 = vld [vmem:[#allocation12 + $0x38] sm:$0xff]
        %v538 = vld [vmem:[#allocation12 + $0x40] sm:$0xff]
        %v539 = vld [vmem:[#allocation12 + $0x48] sm:$0xff]
        %v540 = vld [vmem:[#allocation12 + $0x50] sm:$0xff]
        %v541 = vld [vmem:[#allocation12 + $0x58] sm:$0xff]
        %v542 = vld [vmem:[#allocation12 + $0x60] sm:$0xff]
        %v543 = vld [vmem:[#allocation12 + $0x68] sm:$0xff]
        %v544 = vld [vmem:[#allocation12 + $0x70] sm:$0xff]
        %v545 = vld [vmem:[#allocation12 + $0x78] sm:$0xff]
        %s546 = sld [smem:[#allocation2 + %s24]]
        %v547 = vld [vmem:[#allocation6] sm:$0xff]
        %v548 = vld [vmem:[#allocation6 + $0x8] sm:$0xff]
        %v549 = vld [vmem:[#allocation6 + $0x10] sm:$0xff]
        %v550 = vld [vmem:[#allocation6 + $0x18] sm:$0xff]
        %v551 = vld [vmem:[#allocation6 + $0x20] sm:$0xff]
        %v552 = vld [vmem:[#allocation6 + $0x28] sm:$0xff]
        %v553 = vld [vmem:[#allocation6 + $0x30] sm:$0xff]
        %v554 = vld [vmem:[#allocation6 + $0x38] sm:$0xff]
        %v555 = vld [vmem:[#allocation6 + $0x40] sm:$0xff]
        %v556 = vld [vmem:[#allocation6 + $0x48] sm:$0xff]
        %v557 = vld [vmem:[#allocation6 + $0x50] sm:$0xff]
        %v558 = vld [vmem:[#allocation6 + $0x58] sm:$0xff]
        %v559 = vld [vmem:[#allocation6 + $0x60] sm:$0xff]
        %v560 = vld [vmem:[#allocation6 + $0x68] sm:$0xff]
        %v561 = vld [vmem:[#allocation6 + $0x70] sm:$0xff]
        %v562 = vld [vmem:[#allocation6 + $0x78] sm:$0xff]
        %563 = vmatprep.subr.mxu0 0.0
        %564 = vmatpush1.msra.mxu0 %v545
        %565 = vmatprep.subr.mxu0 0.0
        %566 = vmatpush1.msra.mxu0 %v544
        %567 = vmatprep.subr.mxu0 0.0
        %568 = vmatpush1.msra.mxu0 %v543
        %569 = vmatprep.subr.mxu0 0.0
        %570 = vmatpush1.msra.mxu0 %v542
        %571 = vmatprep.subr.mxu0 0.0
        %572 = vmatpush1.msra.mxu0 %v541
        %573 = vmatprep.subr.mxu0 0.0
        %574 = vmatpush1.msra.mxu0 %v540
        %575 = vmatprep.subr.mxu0 0.0
        %576 = vmatpush1.msra.mxu0 %v539
        %577 = vmatprep.subr.mxu0 0.0
        %578 = vmatpush1.msra.mxu0 %v538
        %579 = vmatprep.subr.mxu0 0.0
        %580 = vmatpush1.msra.mxu0 %v537
        %581 = vmatprep.subr.mxu0 0.0
        %582 = vmatpush1.msra.mxu0 %v536
        %583 = vmatprep.subr.mxu0 0.0
        %584 = vmatpush1.msra.mxu0 %v535
        %585 = vmatprep.subr.mxu0 0.0
        %586 = vmatpush1.msra.mxu0 %v534
        %587 = vmatprep.subr.mxu0 0.0
        %588 = vmatpush1.msra.mxu0 %v533
        %589 = vmatprep.subr.mxu0 0.0
        %590 = vmatpush1.msra.mxu0 %v532
        %591 = vmatprep.subr.mxu0 0.0
        %592 = vmatpush1.msra.mxu0 %v531
        %593 = vmatprep.subr.mxu0 0.0
        %594 = vmatpush1.msra.mxu0 %v530
        %595 = vmatprep.subr.mxu0 0.0
        %596 = vmatpush2.msra.mxu0 0.0
        %597 = vmatprep.subr.mxu0 0.0
        %598 = vmatpush2.msra.mxu0 0.0
        %599 = vmatprep.subr.mxu0 0.0
        %600 = vmatpush2.msra.mxu0 0.0
        %601 = vmatprep.subr.mxu0 0.0
        %602 = vmatpush2.msra.mxu0 0.0
        %603 = vmatprep.subr.mxu0 0.0
        %604 = vmatpush2.msra.mxu0 0.0
        %605 = vmatprep.subr.mxu0 0.0
        %606 = vmatpush2.msra.mxu0 0.0
        %607 = vmatprep.subr.mxu0 0.0
        %608 = vmatpush2.msra.mxu0 0.0
        %609 = vmatprep.subr.mxu0 0.0
        %610 = vmatpush2.msra.mxu0 0.0
        %611 = vmatprep.subr.mxu0 0.0
        %612 = vmatpush2.msra.mxu0 0.0
        %613 = vmatprep.subr.mxu0 0.0
        %614 = vmatpush2.msra.mxu0 0.0
        %615 = vmatprep.subr.mxu0 0.0
        %616 = vmatpush2.msra.mxu0 0.0
        %617 = vmatprep.subr.mxu0 0.0
        %618 = vmatpush2.msra.mxu0 0.0
        %619 = vmatprep.subr.mxu0 0.0
        %620 = vmatpush2.msra.mxu0 0.0
        %621 = vmatprep.subr.mxu0 0.0
        %622 = vmatpush2.msra.mxu0 0.0
        %623 = vmatprep.subr.mxu0 0.0
        %624 = vmatpush2.msra.mxu0 0.0
        %625 = vmatprep.subr.mxu0 0.0
        %626 = vmatpush2.msra.mxu0 0.0
        %627 = vmatprep.mubr.f32.mxu0 0.0
        %628 = vmatmul.mubr.f32.gmra.mxu0 %v547
        %v629 = vpop.f32.mrf.mxu0
        %v630 = vadd.f32 0.0, %v629
        %v631 = vpop.f32.mrf.mxu0
        %632 = vmatprep.mubr.f32.mxu0 0.0
        %633 = vmatmul.mubr.f32.gmra.mxu0 %v548
        %v634 = vpop.f32.mrf.mxu0
        %v635 = vadd.f32 0.0, %v634
        %v636 = vpop.f32.mrf.mxu0
        %637 = vmatprep.mubr.f32.mxu0 0.0
        %638 = vmatmul.mubr.f32.gmra.mxu0 %v549
        %v639 = vpop.f32.mrf.mxu0
        %v640 = vadd.f32 0.0, %v639
        %v641 = vpop.f32.mrf.mxu0
        %642 = vmatprep.mubr.f32.mxu0 0.0
        %643 = vmatmul.mubr.f32.gmra.mxu0 %v550
        %v644 = vpop.f32.mrf.mxu0
        %v645 = vadd.f32 0.0, %v644
        %v646 = vpop.f32.mrf.mxu0
        %647 = vmatprep.mubr.f32.mxu0 0.0
        %648 = vmatmul.mubr.f32.gmra.mxu0 %v551
        %v649 = vpop.f32.mrf.mxu0
        %v650 = vadd.f32 0.0, %v649
        %v651 = vpop.f32.mrf.mxu0
        %652 = vmatprep.mubr.f32.mxu0 0.0
        %653 = vmatmul.mubr.f32.gmra.mxu0 %v552
        %v654 = vpop.f32.mrf.mxu0
        %v655 = vadd.f32 0.0, %v654
        %v656 = vpop.f32.mrf.mxu0
        %657 = vmatprep.mubr.f32.mxu0 0.0
        %658 = vmatmul.mubr.f32.gmra.mxu0 %v553
        %v659 = vpop.f32.mrf.mxu0
        %v660 = vadd.f32 0.0, %v659
        %v661 = vpop.f32.mrf.mxu0
        %662 = vmatprep.mubr.f32.mxu0 0.0
        %663 = vmatmul.mubr.f32.gmra.mxu0 %v554
        %v664 = vpop.f32.mrf.mxu0
        %v665 = vadd.f32 0.0, %v664
        %v666 = vpop.f32.mrf.mxu0
        %667 = vmatprep.mubr.f32.mxu0 0.0
        %668 = vmatmul.mubr.f32.gmra.mxu0 %v555
        %v669 = vpop.f32.mrf.mxu0
        %v670 = vadd.f32 0.0, %v669
        %v671 = vpop.f32.mrf.mxu0
        %672 = vmatprep.mubr.f32.mxu0 0.0
        %673 = vmatmul.mubr.f32.gmra.mxu0 %v556
        %v674 = vpop.f32.mrf.mxu0
        %v675 = vadd.f32 0.0, %v674
        %v676 = vpop.f32.mrf.mxu0
        %677 = vmatprep.mubr.f32.mxu0 0.0
        %678 = vmatmul.mubr.f32.gmra.mxu0 %v557
        %v679 = vpop.f32.mrf.mxu0
        %v680 = vadd.f32 0.0, %v679
        %v681 = vpop.f32.mrf.mxu0
        %682 = vmatprep.mubr.f32.mxu0 0.0
        %683 = vmatmul.mubr.f32.gmra.mxu0 %v558
        %v684 = vpop.f32.mrf.mxu0
        %v685 = vadd.f32 0.0, %v684
        %v686 = vpop.f32.mrf.mxu0
        %687 = vmatprep.mubr.f32.mxu0 0.0
        %688 = vmatmul.mubr.f32.gmra.mxu0 %v559
        %v689 = vpop.f32.mrf.mxu0
        %v690 = vadd.f32 0.0, %v689
        %v691 = vpop.f32.mrf.mxu0
        %692 = vmatprep.mubr.f32.mxu0 0.0
        %693 = vmatmul.mubr.f32.gmra.mxu0 %v560
        %v694 = vpop.f32.mrf.mxu0
        %v695 = vadd.f32 0.0, %v694
        %v696 = vpop.f32.mrf.mxu0
        %697 = vmatprep.mubr.f32.mxu0 0.0
        %698 = vmatmul.mubr.f32.gmra.mxu0 %v561
        %v699 = vpop.f32.mrf.mxu0
        %v700 = vadd.f32 0.0, %v699
        %v701 = vpop.f32.mrf.mxu0
        %702 = vmatprep.mubr.f32.mxu0 0.0
        %703 = vmatmul.mubr.f32.gmra.mxu0 %v562
        %v704 = vpop.f32.mrf.mxu0
        %v705 = vadd.f32 0.0, %v704
        %v706 = vpop.f32.mrf.mxu0
        %707 = vdwg.mxu0
        %s708 = sadd.f32 %s546, 1.0
        %v709 = vstv %s708
        %v710 = vmul.f32 %v709, %v530
        %v711 = vmul.f32 %v709, %v531
        %v712 = vmul.f32 %v709, %v532
        %v713 = vmul.f32 %v709, %v533
        %v714 = vmul.f32 %v709, %v534
        %v715 = vmul.f32 %v709, %v535
        %v716 = vmul.f32 %v709, %v536
        %v717 = vmul.f32 %v709, %v537
        %v718 = vmul.f32 %v709, %v538
        %v719 = vmul.f32 %v709, %v539
        %v720 = vmul.f32 %v709, %v540
        %v721 = vmul.f32 %v709, %v541
        %v722 = vmul.f32 %v709, %v542
        %v723 = vmul.f32 %v709, %v543
        %v724 = vmul.f32 %v709, %v544
        %v725 = vmul.f32 %v709, %v545
        %v726 = vadd.f32 %v710, %v630
        %v727 = vadd.f32 %v711, %v635
        %v728 = vadd.f32 %v712, %v640
        %v729 = vadd.f32 %v713, %v645
        %v730 = vadd.f32 %v714, %v650
        %v731 = vadd.f32 %v715, %v655
        %v732 = vadd.f32 %v716, %v660
        %v733 = vadd.f32 %v717, %v665
        %v734 = vadd.f32 %v718, %v670
        %v735 = vadd.f32 %v719, %v675
        %v736 = vadd.f32 %v720, %v680
        %v737 = vadd.f32 %v721, %v685
        %v738 = vadd.f32 %v722, %v690
        %v739 = vadd.f32 %v723, %v695
        %v740 = vadd.f32 %v724, %v700
        %v741 = vadd.f32 %v725, %v705
        %v742 = vld [vmem:[%s417] sm:$0xff]
        %v743 = vld [vmem:[%s417 + $0x8] sm:$0xff]
        %v744 = vld [vmem:[%s417 + $0x10] sm:$0xff]
        %v745 = vld [vmem:[%s417 + $0x18] sm:$0xff]
        %v746 = vld [vmem:[%s417 + $0x20] sm:$0xff]
        %v747 = vld [vmem:[%s417 + $0x28] sm:$0xff]
        %v748 = vld [vmem:[%s417 + $0x30] sm:$0xff]
        %v749 = vld [vmem:[%s417 + $0x38] sm:$0xff]
        %v750 = vld [vmem:[%s417 + $0x40] sm:$0xff]
        %v751 = vld [vmem:[%s417 + $0x48] sm:$0xff]
        %v752 = vld [vmem:[%s417 + $0x50] sm:$0xff]
        %v753 = vld [vmem:[%s417 + $0x58] sm:$0xff]
        %v754 = vld [vmem:[%s417 + $0x60] sm:$0xff]
        %v755 = vld [vmem:[%s417 + $0x68] sm:$0xff]
        %v756 = vld [vmem:[%s417 + $0x70] sm:$0xff]
        %v757 = vld [vmem:[%s417 + $0x78] sm:$0xff]
        %v758 = vld [vmem:[%s487] sm:$0x1]
        %v760 = vlaneseq
        %v761 = vshrl.u32 %v760, 7
        %v762 = vsub.s32 0, %v761
        %v763 = vrot.slane %v758, %v762
        %765 = vmatprep.subr.mxu0 0.0
        %766 = vmatpush1.msra.mxu0 %v757
        %767 = vmatprep.subr.mxu0 0.0
        %768 = vmatpush1.msra.mxu0 %v756
        %769 = vmatprep.subr.mxu0 0.0
        %770 = vmatpush1.msra.mxu0 %v755
        %771 = vmatprep.subr.mxu0 0.0
        %772 = vmatpush1.msra.mxu0 %v754
        %773 = vmatprep.subr.mxu0 0.0
        %774 = vmatpush1.msra.mxu0 %v753
        %775 = vmatprep.subr.mxu0 0.0
        %776 = vmatpush1.msra.mxu0 %v752
        %777 = vmatprep.subr.mxu0 0.0
        %778 = vmatpush1.msra.mxu0 %v751
        %779 = vmatprep.subr.mxu0 0.0
        %780 = vmatpush1.msra.mxu0 %v750
        %781 = vmatprep.subr.mxu0 0.0
        %782 = vmatpush1.msra.mxu0 %v749
        %783 = vmatprep.subr.mxu0 0.0
        %784 = vmatpush1.msra.mxu0 %v748
        %785 = vmatprep.subr.mxu0 0.0
        %786 = vmatpush1.msra.mxu0 %v747
        %787 = vmatprep.subr.mxu0 0.0
        %788 = vmatpush1.msra.mxu0 %v746
        %789 = vmatprep.subr.mxu0 0.0
        %790 = vmatpush1.msra.mxu0 %v745
        %791 = vmatprep.subr.mxu0 0.0
        %792 = vmatpush1.msra.mxu0 %v744
        %793 = vmatprep.subr.mxu0 0.0
        %794 = vmatpush1.msra.mxu0 %v743
        %795 = vmatprep.subr.mxu0 0.0
        %796 = vmatpush1.msra.mxu0 %v742
        %797 = vmatprep.subr.mxu0 0.0
        %798 = vmatpush2.msra.mxu0 0.0
        %799 = vmatprep.subr.mxu0 0.0
        %800 = vmatpush2.msra.mxu0 0.0
        %801 = vmatprep.subr.mxu0 0.0
        %802 = vmatpush2.msra.mxu0 0.0
        %803 = vmatprep.subr.mxu0 0.0
        %804 = vmatpush2.msra.mxu0 0.0
        %805 = vmatprep.subr.mxu0 0.0
        %806 = vmatpush2.msra.mxu0 0.0
        %807 = vmatprep.subr.mxu0 0.0
        %808 = vmatpush2.msra.mxu0 0.0
        %809 = vmatprep.subr.mxu0 0.0
        %810 = vmatpush2.msra.mxu0 0.0
        %811 = vmatprep.subr.mxu0 0.0
        %812 = vmatpush2.msra.mxu0 0.0
        %813 = vmatprep.subr.mxu0 0.0
        %814 = vmatpush2.msra.mxu0 0.0
        %815 = vmatprep.subr.mxu0 0.0
        %816 = vmatpush2.msra.mxu0 0.0
        %817 = vmatprep.subr.mxu0 0.0
        %818 = vmatpush2.msra.mxu0 0.0
        %819 = vmatprep.subr.mxu0 0.0
        %820 = vmatpush2.msra.mxu0 0.0
        %821 = vmatprep.subr.mxu0 0.0
        %822 = vmatpush2.msra.mxu0 0.0
        %823 = vmatprep.subr.mxu0 0.0
        %824 = vmatpush2.msra.mxu0 0.0
        %825 = vmatprep.subr.mxu0 0.0
        %826 = vmatpush2.msra.mxu0 0.0
        %827 = vmatprep.subr.mxu0 0.0
        %828 = vmatpush2.msra.mxu0 0.0
        %829 = vmatprep.mubr.f32.mxu0 0.0
        %830 = vmatmul.mubr.f32.gmra.mxu0 %v726
        %v831 = vpop.f32.mrf.mxu0
        %v832 = vadd.f32 %v763, %v831
        %v833 = vpop.f32.mrf.mxu0
        %834 = vmatprep.mubr.f32.mxu0 0.0
        %835 = vmatmul.mubr.f32.gmra.mxu0 %v727
        %v836 = vpop.f32.mrf.mxu0
        %v837 = vadd.f32 %v763, %v836
        %v838 = vpop.f32.mrf.mxu0
        %839 = vmatprep.mubr.f32.mxu0 0.0
        %840 = vmatmul.mubr.f32.gmra.mxu0 %v728
        %v841 = vpop.f32.mrf.mxu0
        %v842 = vadd.f32 %v763, %v841
        %v843 = vpop.f32.mrf.mxu0
        %844 = vmatprep.mubr.f32.mxu0 0.0
        %845 = vmatmul.mubr.f32.gmra.mxu0 %v729
        %v846 = vpop.f32.mrf.mxu0
        %v847 = vadd.f32 %v763, %v846
        %v848 = vpop.f32.mrf.mxu0
        %849 = vmatprep.mubr.f32.mxu0 0.0
        %850 = vmatmul.mubr.f32.gmra.mxu0 %v730
        %v851 = vpop.f32.mrf.mxu0
        %v852 = vadd.f32 %v763, %v851
        %v853 = vpop.f32.mrf.mxu0
        %854 = vmatprep.mubr.f32.mxu0 0.0
        %855 = vmatmul.mubr.f32.gmra.mxu0 %v731
        %v856 = vpop.f32.mrf.mxu0
        %v857 = vadd.f32 %v763, %v856
        %v858 = vpop.f32.mrf.mxu0
        %859 = vmatprep.mubr.f32.mxu0 0.0
        %860 = vmatmul.mubr.f32.gmra.mxu0 %v732
        %v861 = vpop.f32.mrf.mxu0
        %v862 = vadd.f32 %v763, %v861
        %v863 = vpop.f32.mrf.mxu0
        %864 = vmatprep.mubr.f32.mxu0 0.0
        %865 = vmatmul.mubr.f32.gmra.mxu0 %v733
        %v866 = vpop.f32.mrf.mxu0
        %v867 = vadd.f32 %v763, %v866
        %v868 = vpop.f32.mrf.mxu0
        %869 = vmatprep.mubr.f32.mxu0 0.0
        %870 = vmatmul.mubr.f32.gmra.mxu0 %v734
        %v871 = vpop.f32.mrf.mxu0
        %v872 = vadd.f32 %v763, %v871
        %v873 = vpop.f32.mrf.mxu0
        %874 = vmatprep.mubr.f32.mxu0 0.0
        %875 = vmatmul.mubr.f32.gmra.mxu0 %v735
        %v876 = vpop.f32.mrf.mxu0
        %v877 = vadd.f32 %v763, %v876
        %v878 = vpop.f32.mrf.mxu0
        %879 = vmatprep.mubr.f32.mxu0 0.0
        %880 = vmatmul.mubr.f32.gmra.mxu0 %v736
        %v881 = vpop.f32.mrf.mxu0
        %v882 = vadd.f32 %v763, %v881
        %v883 = vpop.f32.mrf.mxu0
        %884 = vmatprep.mubr.f32.mxu0 0.0
        %885 = vmatmul.mubr.f32.gmra.mxu0 %v737
        %v886 = vpop.f32.mrf.mxu0
        %v887 = vadd.f32 %v763, %v886
        %v888 = vpop.f32.mrf.mxu0
        %889 = vmatprep.mubr.f32.mxu0 0.0
        %890 = vmatmul.mubr.f32.gmra.mxu0 %v738
        %v891 = vpop.f32.mrf.mxu0
        %v892 = vadd.f32 %v763, %v891
        %v893 = vpop.f32.mrf.mxu0
        %894 = vmatprep.mubr.f32.mxu0 0.0
        %895 = vmatmul.mubr.f32.gmra.mxu0 %v739
        %v896 = vpop.f32.mrf.mxu0
        %v897 = vadd.f32 %v763, %v896
        %v898 = vpop.f32.mrf.mxu0
        %899 = vmatprep.mubr.f32.mxu0 0.0
        %900 = vmatmul.mubr.f32.gmra.mxu0 %v740
        %v901 = vpop.f32.mrf.mxu0
        %v902 = vadd.f32 %v763, %v901
        %v903 = vpop.f32.mrf.mxu0
        %904 = vmatprep.mubr.f32.mxu0 0.0
        %905 = vmatmul.mubr.f32.gmra.mxu0 %v741
        %v906 = vpop.f32.mrf.mxu0
        %v907 = vadd.f32 %v763, %v906
        %v908 = vpop.f32.mrf.mxu0
        %909 = vdwg.mxu0
        %vm910 = vcmp.gt.f32.partialorder %v832, 0.0
        %vm911 = vcmp.gt.f32.partialorder %v837, 0.0
        %vm912 = vcmp.gt.f32.partialorder %v842, 0.0
        %vm913 = vcmp.gt.f32.partialorder %v847, 0.0
        %vm914 = vcmp.gt.f32.partialorder %v852, 0.0
        %vm915 = vcmp.gt.f32.partialorder %v857, 0.0
        %vm916 = vcmp.gt.f32.partialorder %v862, 0.0
        %vm917 = vcmp.gt.f32.partialorder %v867, 0.0
        %vm918 = vcmp.gt.f32.partialorder %v872, 0.0
        %vm919 = vcmp.gt.f32.partialorder %v877, 0.0
        %vm920 = vcmp.gt.f32.partialorder %v882, 0.0
        %vm921 = vcmp.gt.f32.partialorder %v887, 0.0
        %vm922 = vcmp.gt.f32.partialorder %v892, 0.0
        %vm923 = vcmp.gt.f32.partialorder %v897, 0.0
        %vm924 = vcmp.gt.f32.partialorder %v902, 0.0
        %vm925 = vcmp.gt.f32.partialorder %v907, 0.0
        %v926 = vmin.f32 %v832, 0.0
        %v927 = vmin.f32 %v837, 0.0
        %v928 = vmin.f32 %v842, 0.0
        %v929 = vmin.f32 %v847, 0.0
        %v930 = vmin.f32 %v852, 0.0
        %v931 = vmin.f32 %v857, 0.0
        %v932 = vmin.f32 %v862, 0.0
        %v933 = vmin.f32 %v867, 0.0
        %v934 = vmin.f32 %v872, 0.0
        %v935 = vmin.f32 %v877, 0.0
        %v936 = vmin.f32 %v882, 0.0
        %v937 = vmin.f32 %v887, 0.0
        %v938 = vmin.f32 %v892, 0.0
        %v939 = vmin.f32 %v897, 0.0
        %v940 = vmin.f32 %v902, 0.0
        %v941 = vmin.f32 %v907, 0.0
        %v942 = vmul.f32 %v926, 1.442695
        %v943 = vpow.pop %v942
        %v944 = vmul.f32 %v927, 1.442695
        %v945 = vpow.pop %v944
        %v946 = vmul.f32 %v928, 1.442695
        %v947 = vpow.pop %v946
        %v948 = vmul.f32 %v929, 1.442695
        %v949 = vpow.pop %v948
        %v950 = vmul.f32 %v930, 1.442695
        %v951 = vpow.pop %v950
        %v952 = vmul.f32 %v931, 1.442695
        %v953 = vpow.pop %v952
        %v954 = vmul.f32 %v932, 1.442695
        %v955 = vpow.pop %v954
        %v956 = vmul.f32 %v933, 1.442695
        %v957 = vpow.pop %v956
        %v958 = vmul.f32 %v934, 1.442695
        %v959 = vpow.pop %v958
        %v960 = vmul.f32 %v935, 1.442695
        %v961 = vpow.pop %v960
        %v962 = vmul.f32 %v936, 1.442695
        %v963 = vpow.pop %v962
        %v964 = vmul.f32 %v937, 1.442695
        %v965 = vpow.pop %v964
        %v966 = vmul.f32 %v938, 1.442695
        %v967 = vpow.pop %v966
        %v968 = vmul.f32 %v939, 1.442695
        %v969 = vpow.pop %v968
        %v970 = vmul.f32 %v940, 1.442695
        %v971 = vpow.pop %v970
        %v972 = vmul.f32 %v941, 1.442695
        %v973 = vpow.pop %v972
        %v974 = vsub.f32 %v943, 1.0
        %v975 = vsub.f32 %v945, 1.0
        %v976 = vsub.f32 %v947, 1.0
        %v977 = vsub.f32 %v949, 1.0
        %v978 = vsub.f32 %v951, 1.0
        %v979 = vsub.f32 %v953, 1.0
        %v980 = vsub.f32 %v955, 1.0
        %v981 = vsub.f32 %v957, 1.0
        %v982 = vsub.f32 %v959, 1.0
        %v983 = vsub.f32 %v961, 1.0
        %v984 = vsub.f32 %v963, 1.0
        %v985 = vsub.f32 %v965, 1.0
        %v986 = vsub.f32 %v967, 1.0
        %v987 = vsub.f32 %v969, 1.0
        %v988 = vsub.f32 %v971, 1.0
        %v989 = vsub.f32 %v973, 1.0
        %v990 = vsel %vm910, %v832, %v974
        %v991 = vsel %vm911, %v837, %v975
        %v992 = vsel %vm912, %v842, %v976
        %v993 = vsel %vm913, %v847, %v977
        %v994 = vsel %vm914, %v852, %v978
        %v995 = vsel %vm915, %v857, %v979
        %v996 = vsel %vm916, %v862, %v980
        %v997 = vsel %vm917, %v867, %v981
        %v998 = vsel %vm918, %v872, %v982
        %v999 = vsel %vm919, %v877, %v983
        %v1000 = vsel %vm920, %v882, %v984
        %v1001 = vsel %vm921, %v887, %v985
        %v1002 = vsel %vm922, %v892, %v986
        %v1003 = vsel %vm923, %v897, %v987
        %v1004 = vsel %vm924, %v902, %v988
        %v1005 = vsel %vm925, %v907, %v989
        %v1006 = vld [vmem:[%s426] sm:$0xff]
        %v1007 = vld [vmem:[%s426 + $0x8] sm:$0xff]
        %v1008 = vld [vmem:[%s426 + $0x10] sm:$0xff]
        %v1009 = vld [vmem:[%s426 + $0x18] sm:$0xff]
        %v1010 = vld [vmem:[%s426 + $0x20] sm:$0xff]
        %v1011 = vld [vmem:[%s426 + $0x28] sm:$0xff]
        %v1012 = vld [vmem:[%s426 + $0x30] sm:$0xff]
        %v1013 = vld [vmem:[%s426 + $0x38] sm:$0xff]
        %v1014 = vld [vmem:[%s426 + $0x40] sm:$0xff]
        %v1015 = vld [vmem:[%s426 + $0x48] sm:$0xff]
        %v1016 = vld [vmem:[%s426 + $0x50] sm:$0xff]
        %v1017 = vld [vmem:[%s426 + $0x58] sm:$0xff]
        %v1018 = vld [vmem:[%s426 + $0x60] sm:$0xff]
        %v1019 = vld [vmem:[%s426 + $0x68] sm:$0xff]
        %v1020 = vld [vmem:[%s426 + $0x70] sm:$0xff]
        %v1021 = vld [vmem:[%s426 + $0x78] sm:$0xff]
        %v1022 = vld [vmem:[%s490] sm:$0x1]
        %v1024 = vlaneseq
        %v1025 = vshrl.u32 %v1024, 7
        %v1026 = vsub.s32 0, %v1025
        %v1027 = vrot.slane %v1022, %v1026
        %1029 = vmatprep.subr.mxu0 0.0
        %1030 = vmatpush1.msra.mxu0 %v1021
        %1031 = vmatprep.subr.mxu0 0.0
        %1032 = vmatpush1.msra.mxu0 %v1020
        %1033 = vmatprep.subr.mxu0 0.0
        %1034 = vmatpush1.msra.mxu0 %v1019
        %1035 = vmatprep.subr.mxu0 0.0
        %1036 = vmatpush1.msra.mxu0 %v1018
        %1037 = vmatprep.subr.mxu0 0.0
        %1038 = vmatpush1.msra.mxu0 %v1017
        %1039 = vmatprep.subr.mxu0 0.0
        %1040 = vmatpush1.msra.mxu0 %v1016
        %1041 = vmatprep.subr.mxu0 0.0
        %1042 = vmatpush1.msra.mxu0 %v1015
        %1043 = vmatprep.subr.mxu0 0.0
        %1044 = vmatpush1.msra.mxu0 %v1014
        %1045 = vmatprep.subr.mxu0 0.0
        %1046 = vmatpush1.msra.mxu0 %v1013
        %1047 = vmatprep.subr.mxu0 0.0
        %1048 = vmatpush1.msra.mxu0 %v1012
        %1049 = vmatprep.subr.mxu0 0.0
        %1050 = vmatpush1.msra.mxu0 %v1011
        %1051 = vmatprep.subr.mxu0 0.0
        %1052 = vmatpush1.msra.mxu0 %v1010
        %1053 = vmatprep.subr.mxu0 0.0
        %1054 = vmatpush1.msra.mxu0 %v1009
        %1055 = vmatprep.subr.mxu0 0.0
        %1056 = vmatpush1.msra.mxu0 %v1008
        %1057 = vmatprep.subr.mxu0 0.0
        %1058 = vmatpush1.msra.mxu0 %v1007
        %1059 = vmatprep.subr.mxu0 0.0
        %1060 = vmatpush1.msra.mxu0 %v1006
        %1061 = vmatprep.subr.mxu0 0.0
        %1062 = vmatpush2.msra.mxu0 0.0
        %1063 = vmatprep.subr.mxu0 0.0
        %1064 = vmatpush2.msra.mxu0 0.0
        %1065 = vmatprep.subr.mxu0 0.0
        %1066 = vmatpush2.msra.mxu0 0.0
        %1067 = vmatprep.subr.mxu0 0.0
        %1068 = vmatpush2.msra.mxu0 0.0
        %1069 = vmatprep.subr.mxu0 0.0
        %1070 = vmatpush2.msra.mxu0 0.0
        %1071 = vmatprep.subr.mxu0 0.0
        %1072 = vmatpush2.msra.mxu0 0.0
        %1073 = vmatprep.subr.mxu0 0.0
        %1074 = vmatpush2.msra.mxu0 0.0
        %1075 = vmatprep.subr.mxu0 0.0
        %1076 = vmatpush2.msra.mxu0 0.0
        %1077 = vmatprep.subr.mxu0 0.0
        %1078 = vmatpush2.msra.mxu0 0.0
        %1079 = vmatprep.subr.mxu0 0.0
        %1080 = vmatpush2.msra.mxu0 0.0
        %1081 = vmatprep.subr.mxu0 0.0
        %1082 = vmatpush2.msra.mxu0 0.0
        %1083 = vmatprep.subr.mxu0 0.0
        %1084 = vmatpush2.msra.mxu0 0.0
        %1085 = vmatprep.subr.mxu0 0.0
        %1086 = vmatpush2.msra.mxu0 0.0
        %1087 = vmatprep.subr.mxu0 0.0
        %1088 = vmatpush2.msra.mxu0 0.0
        %1089 = vmatprep.subr.mxu0 0.0
        %1090 = vmatpush2.msra.mxu0 0.0
        %1091 = vmatprep.subr.mxu0 0.0
        %1092 = vmatpush2.msra.mxu0 0.0
        %1093 = vmatprep.mubr.f32.mxu0 0.0
        %1094 = vmatmul.mubr.f32.gmra.mxu0 %v990
        %v1095 = vpop.f32.mrf.mxu0
        %v1096 = vadd.f32 %v1027, %v1095
        %v1097 = vpop.f32.mrf.mxu0
        %1098 = vmatprep.mubr.f32.mxu0 0.0
        %1099 = vmatmul.mubr.f32.gmra.mxu0 %v991
        %v1100 = vpop.f32.mrf.mxu0
        %v1101 = vadd.f32 %v1027, %v1100
        %v1102 = vpop.f32.mrf.mxu0
        %1103 = vmatprep.mubr.f32.mxu0 0.0
        %1104 = vmatmul.mubr.f32.gmra.mxu0 %v992
        %v1105 = vpop.f32.mrf.mxu0
        %v1106 = vadd.f32 %v1027, %v1105
        %v1107 = vpop.f32.mrf.mxu0
        %1108 = vmatprep.mubr.f32.mxu0 0.0
        %1109 = vmatmul.mubr.f32.gmra.mxu0 %v993
        %v1110 = vpop.f32.mrf.mxu0
        %v1111 = vadd.f32 %v1027, %v1110
        %v1112 = vpop.f32.mrf.mxu0
        %1113 = vmatprep.mubr.f32.mxu0 0.0
        %1114 = vmatmul.mubr.f32.gmra.mxu0 %v994
        %v1115 = vpop.f32.mrf.mxu0
        %v1116 = vadd.f32 %v1027, %v1115
        %v1117 = vpop.f32.mrf.mxu0
        %1118 = vmatprep.mubr.f32.mxu0 0.0
        %1119 = vmatmul.mubr.f32.gmra.mxu0 %v995
        %v1120 = vpop.f32.mrf.mxu0
        %v1121 = vadd.f32 %v1027, %v1120
        %v1122 = vpop.f32.mrf.mxu0
        %1123 = vmatprep.mubr.f32.mxu0 0.0
        %1124 = vmatmul.mubr.f32.gmra.mxu0 %v996
        %v1125 = vpop.f32.mrf.mxu0
        %v1126 = vadd.f32 %v1027, %v1125
        %v1127 = vpop.f32.mrf.mxu0
        %1128 = vmatprep.mubr.f32.mxu0 0.0
        %1129 = vmatmul.mubr.f32.gmra.mxu0 %v997
        %v1130 = vpop.f32.mrf.mxu0
        %v1131 = vadd.f32 %v1027, %v1130
        %v1132 = vpop.f32.mrf.mxu0
        %1133 = vmatprep.mubr.f32.mxu0 0.0
        %1134 = vmatmul.mubr.f32.gmra.mxu0 %v998
        %v1135 = vpop.f32.mrf.mxu0
        %v1136 = vadd.f32 %v1027, %v1135
        %v1137 = vpop.f32.mrf.mxu0
        %1138 = vmatprep.mubr.f32.mxu0 0.0
        %1139 = vmatmul.mubr.f32.gmra.mxu0 %v999
        %v1140 = vpop.f32.mrf.mxu0
        %v1141 = vadd.f32 %v1027, %v1140
        %v1142 = vpop.f32.mrf.mxu0
        %1143 = vmatprep.mubr.f32.mxu0 0.0
        %1144 = vmatmul.mubr.f32.gmra.mxu0 %v1000
        %v1145 = vpop.f32.mrf.mxu0
        %v1146 = vadd.f32 %v1027, %v1145
        %v1147 = vpop.f32.mrf.mxu0
        %1148 = vmatprep.mubr.f32.mxu0 0.0
        %1149 = vmatmul.mubr.f32.gmra.mxu0 %v1001
        %v1150 = vpop.f32.mrf.mxu0
        %v1151 = vadd.f32 %v1027, %v1150
        %v1152 = vpop.f32.mrf.mxu0
        %1153 = vmatprep.mubr.f32.mxu0 0.0
        %1154 = vmatmul.mubr.f32.gmra.mxu0 %v1002
        %v1155 = vpop.f32.mrf.mxu0
        %v1156 = vadd.f32 %v1027, %v1155
        %v1157 = vpop.f32.mrf.mxu0
        %1158 = vmatprep.mubr.f32.mxu0 0.0
        %1159 = vmatmul.mubr.f32.gmra.mxu0 %v1003
        %v1160 = vpop.f32.mrf.mxu0
        %v1161 = vadd.f32 %v1027, %v1160
        %v1162 = vpop.f32.mrf.mxu0
        %1163 = vmatprep.mubr.f32.mxu0 0.0
        %1164 = vmatmul.mubr.f32.gmra.mxu0 %v1004
        %v1165 = vpop.f32.mrf.mxu0
        %v1166 = vadd.f32 %v1027, %v1165
        %v1167 = vpop.f32.mrf.mxu0
        %1168 = vmatprep.mubr.f32.mxu0 0.0
        %1169 = vmatmul.mubr.f32.gmra.mxu0 %v1005
        %v1170 = vpop.f32.mrf.mxu0
        %v1171 = vadd.f32 %v1027, %v1170
        %v1172 = vpop.f32.mrf.mxu0
        %1173 = vdwg.mxu0
        %vm1174 = vcmp.gt.f32.partialorder %v1096, 0.0
        %vm1175 = vcmp.gt.f32.partialorder %v1101, 0.0
        %vm1176 = vcmp.gt.f32.partialorder %v1106, 0.0
        %vm1177 = vcmp.gt.f32.partialorder %v1111, 0.0
        %vm1178 = vcmp.gt.f32.partialorder %v1116, 0.0
        %vm1179 = vcmp.gt.f32.partialorder %v1121, 0.0
        %vm1180 = vcmp.gt.f32.partialorder %v1126, 0.0
        %vm1181 = vcmp.gt.f32.partialorder %v1131, 0.0
        %vm1182 = vcmp.gt.f32.partialorder %v1136, 0.0
        %vm1183 = vcmp.gt.f32.partialorder %v1141, 0.0
        %vm1184 = vcmp.gt.f32.partialorder %v1146, 0.0
        %vm1185 = vcmp.gt.f32.partialorder %v1151, 0.0
        %vm1186 = vcmp.gt.f32.partialorder %v1156, 0.0
        %vm1187 = vcmp.gt.f32.partialorder %v1161, 0.0
        %vm1188 = vcmp.gt.f32.partialorder %v1166, 0.0
        %vm1189 = vcmp.gt.f32.partialorder %v1171, 0.0
        %v1190 = vmin.f32 %v1096, 0.0
        %v1191 = vmin.f32 %v1101, 0.0
        %v1192 = vmin.f32 %v1106, 0.0
        %v1193 = vmin.f32 %v1111, 0.0
        %v1194 = vmin.f32 %v1116, 0.0
        %v1195 = vmin.f32 %v1121, 0.0
        %v1196 = vmin.f32 %v1126, 0.0
        %v1197 = vmin.f32 %v1131, 0.0
        %v1198 = vmin.f32 %v1136, 0.0
        %v1199 = vmin.f32 %v1141, 0.0
        %v1200 = vmin.f32 %v1146, 0.0
        %v1201 = vmin.f32 %v1151, 0.0
        %v1202 = vmin.f32 %v1156, 0.0
        %v1203 = vmin.f32 %v1161, 0.0
        %v1204 = vmin.f32 %v1166, 0.0
        %v1205 = vmin.f32 %v1171, 0.0
        %v1206 = vmul.f32 %v1190, 1.442695
        %v1207 = vpow.pop %v1206
        %v1208 = vmul.f32 %v1191, 1.442695
        %v1209 = vpow.pop %v1208
        %v1210 = vmul.f32 %v1192, 1.442695
        %v1211 = vpow.pop %v1210
        %v1212 = vmul.f32 %v1193, 1.442695
        %v1213 = vpow.pop %v1212
        %v1214 = vmul.f32 %v1194, 1.442695
        %v1215 = vpow.pop %v1214
        %v1216 = vmul.f32 %v1195, 1.442695
        %v1217 = vpow.pop %v1216
        %v1218 = vmul.f32 %v1196, 1.442695
        %v1219 = vpow.pop %v1218
        %v1220 = vmul.f32 %v1197, 1.442695
        %v1221 = vpow.pop %v1220
        %v1222 = vmul.f32 %v1198, 1.442695
        %v1223 = vpow.pop %v1222
        %v1224 = vmul.f32 %v1199, 1.442695
        %v1225 = vpow.pop %v1224
        %v1226 = vmul.f32 %v1200, 1.442695
        %v1227 = vpow.pop %v1226
        %v1228 = vmul.f32 %v1201, 1.442695
        %v1229 = vpow.pop %v1228
        %v1230 = vmul.f32 %v1202, 1.442695
        %v1231 = vpow.pop %v1230
        %v1232 = vmul.f32 %v1203, 1.442695
        %v1233 = vpow.pop %v1232
        %v1234 = vmul.f32 %v1204, 1.442695
        %v1235 = vpow.pop %v1234
        %v1236 = vmul.f32 %v1205, 1.442695
        %v1237 = vpow.pop %v1236
        %v1238 = vsub.f32 %v1207, 1.0
        %v1239 = vsub.f32 %v1209, 1.0
        %v1240 = vsub.f32 %v1211, 1.0
        %v1241 = vsub.f32 %v1213, 1.0
        %v1242 = vsub.f32 %v1215, 1.0
        %v1243 = vsub.f32 %v1217, 1.0
        %v1244 = vsub.f32 %v1219, 1.0
        %v1245 = vsub.f32 %v1221, 1.0
        %v1246 = vsub.f32 %v1223, 1.0
        %v1247 = vsub.f32 %v1225, 1.0
        %v1248 = vsub.f32 %v1227, 1.0
        %v1249 = vsub.f32 %v1229, 1.0
        %v1250 = vsub.f32 %v1231, 1.0
        %v1251 = vsub.f32 %v1233, 1.0
        %v1252 = vsub.f32 %v1235, 1.0
        %v1253 = vsub.f32 %v1237, 1.0
        %v1254 = vsel %vm1174, %v1096, %v1238
        %v1255 = vsel %vm1175, %v1101, %v1239
        %v1256 = vsel %vm1176, %v1106, %v1240
        %v1257 = vsel %vm1177, %v1111, %v1241
        %v1258 = vsel %vm1178, %v1116, %v1242
        %v1259 = vsel %vm1179, %v1121, %v1243
        %v1260 = vsel %vm1180, %v1126, %v1244
        %v1261 = vsel %vm1181, %v1131, %v1245
        %v1262 = vsel %vm1182, %v1136, %v1246
        %v1263 = vsel %vm1183, %v1141, %v1247
        %v1264 = vsel %vm1184, %v1146, %v1248
        %v1265 = vsel %vm1185, %v1151, %v1249
        %v1266 = vsel %vm1186, %v1156, %v1250
        %v1267 = vsel %vm1187, %v1161, %v1251
        %v1268 = vsel %vm1188, %v1166, %v1252
        %v1269 = vsel %vm1189, %v1171, %v1253
        %v1270 = vld [vmem:[%s435] sm:$0xff]
        %v1271 = vld [vmem:[%s435 + $0x8] sm:$0xff]
        %v1272 = vld [vmem:[%s435 + $0x10] sm:$0xff]
        %v1273 = vld [vmem:[%s435 + $0x18] sm:$0xff]
        %v1274 = vld [vmem:[%s435 + $0x20] sm:$0xff]
        %v1275 = vld [vmem:[%s435 + $0x28] sm:$0xff]
        %v1276 = vld [vmem:[%s435 + $0x30] sm:$0xff]
        %v1277 = vld [vmem:[%s435 + $0x38] sm:$0xff]
        %v1278 = vld [vmem:[%s435 + $0x40] sm:$0xff]
        %v1279 = vld [vmem:[%s435 + $0x48] sm:$0xff]
        %v1280 = vld [vmem:[%s435 + $0x50] sm:$0xff]
        %v1281 = vld [vmem:[%s435 + $0x58] sm:$0xff]
        %v1282 = vld [vmem:[%s435 + $0x60] sm:$0xff]
        %v1283 = vld [vmem:[%s435 + $0x68] sm:$0xff]
        %v1284 = vld [vmem:[%s435 + $0x70] sm:$0xff]
        %v1285 = vld [vmem:[%s435 + $0x78] sm:$0xff]
        %v1286 = vld [vmem:[%s493] sm:$0x1]
        %v1288 = vlaneseq
        %v1289 = vshrl.u32 %v1288, 7
        %v1290 = vsub.s32 0, %v1289
        %v1291 = vrot.slane %v1286, %v1290
        %1293 = vmatprep.subr.mxu0 0.0
        %1294 = vmatpush1.msra.mxu0 %v1285
        %1295 = vmatprep.subr.mxu0 0.0
        %1296 = vmatpush1.msra.mxu0 %v1284
        %1297 = vmatprep.subr.mxu0 0.0
        %1298 = vmatpush1.msra.mxu0 %v1283
        %1299 = vmatprep.subr.mxu0 0.0
        %1300 = vmatpush1.msra.mxu0 %v1282
        %1301 = vmatprep.subr.mxu0 0.0
        %1302 = vmatpush1.msra.mxu0 %v1281
        %1303 = vmatprep.subr.mxu0 0.0
        %1304 = vmatpush1.msra.mxu0 %v1280
        %1305 = vmatprep.subr.mxu0 0.0
        %1306 = vmatpush1.msra.mxu0 %v1279
        %1307 = vmatprep.subr.mxu0 0.0
        %1308 = vmatpush1.msra.mxu0 %v1278
        %1309 = vmatprep.subr.mxu0 0.0
        %1310 = vmatpush1.msra.mxu0 %v1277
        %1311 = vmatprep.subr.mxu0 0.0
        %1312 = vmatpush1.msra.mxu0 %v1276
        %1313 = vmatprep.subr.mxu0 0.0
        %1314 = vmatpush1.msra.mxu0 %v1275
        %1315 = vmatprep.subr.mxu0 0.0
        %1316 = vmatpush1.msra.mxu0 %v1274
        %1317 = vmatprep.subr.mxu0 0.0
        %1318 = vmatpush1.msra.mxu0 %v1273
        %1319 = vmatprep.subr.mxu0 0.0
        %1320 = vmatpush1.msra.mxu0 %v1272
        %1321 = vmatprep.subr.mxu0 0.0
        %1322 = vmatpush1.msra.mxu0 %v1271
        %1323 = vmatprep.subr.mxu0 0.0
        %1324 = vmatpush1.msra.mxu0 %v1270
        %1325 = vmatprep.subr.mxu0 0.0
        %1326 = vmatpush2.msra.mxu0 0.0
        %1327 = vmatprep.subr.mxu0 0.0
        %1328 = vmatpush2.msra.mxu0 0.0
        %1329 = vmatprep.subr.mxu0 0.0
        %1330 = vmatpush2.msra.mxu0 0.0
        %1331 = vmatprep.subr.mxu0 0.0
        %1332 = vmatpush2.msra.mxu0 0.0
        %1333 = vmatprep.subr.mxu0 0.0
        %1334 = vmatpush2.msra.mxu0 0.0
        %1335 = vmatprep.subr.mxu0 0.0
        %1336 = vmatpush2.msra.mxu0 0.0
        %1337 = vmatprep.subr.mxu0 0.0
        %1338 = vmatpush2.msra.mxu0 0.0
        %1339 = vmatprep.subr.mxu0 0.0
        %1340 = vmatpush2.msra.mxu0 0.0
        %1341 = vmatprep.subr.mxu0 0.0
        %1342 = vmatpush2.msra.mxu0 0.0
        %1343 = vmatprep.subr.mxu0 0.0
        %1344 = vmatpush2.msra.mxu0 0.0
        %1345 = vmatprep.subr.mxu0 0.0
        %1346 = vmatpush2.msra.mxu0 0.0
        %1347 = vmatprep.subr.mxu0 0.0
        %1348 = vmatpush2.msra.mxu0 0.0
        %1349 = vmatprep.subr.mxu0 0.0
        %1350 = vmatpush2.msra.mxu0 0.0
        %1351 = vmatprep.subr.mxu0 0.0
        %1352 = vmatpush2.msra.mxu0 0.0
        %1353 = vmatprep.subr.mxu0 0.0
        %1354 = vmatpush2.msra.mxu0 0.0
        %1355 = vmatprep.subr.mxu0 0.0
        %1356 = vmatpush2.msra.mxu0 0.0
        %1357 = vmatprep.mubr.f32.mxu0 0.0
        %1358 = vmatmul.mubr.f32.gmra.mxu0 %v1254
        %v1359 = vpop.f32.mrf.mxu0
        %v1360 = vadd.f32 %v1291, %v1359
        %v1361 = vpop.f32.mrf.mxu0
        %1362 = vmatprep.mubr.f32.mxu0 0.0
        %1363 = vmatmul.mubr.f32.gmra.mxu0 %v1255
        %v1364 = vpop.f32.mrf.mxu0
        %v1365 = vadd.f32 %v1291, %v1364
        %v1366 = vpop.f32.mrf.mxu0
        %1367 = vmatprep.mubr.f32.mxu0 0.0
        %1368 = vmatmul.mubr.f32.gmra.mxu0 %v1256
        %v1369 = vpop.f32.mrf.mxu0
        %v1370 = vadd.f32 %v1291, %v1369
        %v1371 = vpop.f32.mrf.mxu0
        %1372 = vmatprep.mubr.f32.mxu0 0.0
        %1373 = vmatmul.mubr.f32.gmra.mxu0 %v1257
        %v1374 = vpop.f32.mrf.mxu0
        %v1375 = vadd.f32 %v1291, %v1374
        %v1376 = vpop.f32.mrf.mxu0
        %1377 = vmatprep.mubr.f32.mxu0 0.0
        %1378 = vmatmul.mubr.f32.gmra.mxu0 %v1258
        %v1379 = vpop.f32.mrf.mxu0
        %v1380 = vadd.f32 %v1291, %v1379
        %v1381 = vpop.f32.mrf.mxu0
        %1382 = vmatprep.mubr.f32.mxu0 0.0
        %1383 = vmatmul.mubr.f32.gmra.mxu0 %v1259
        %v1384 = vpop.f32.mrf.mxu0
        %v1385 = vadd.f32 %v1291, %v1384
        %v1386 = vpop.f32.mrf.mxu0
        %1387 = vmatprep.mubr.f32.mxu0 0.0
        %1388 = vmatmul.mubr.f32.gmra.mxu0 %v1260
        %v1389 = vpop.f32.mrf.mxu0
        %v1390 = vadd.f32 %v1291, %v1389
        %v1391 = vpop.f32.mrf.mxu0
        %1392 = vmatprep.mubr.f32.mxu0 0.0
        %1393 = vmatmul.mubr.f32.gmra.mxu0 %v1261
        %v1394 = vpop.f32.mrf.mxu0
        %v1395 = vadd.f32 %v1291, %v1394
        %v1396 = vpop.f32.mrf.mxu0
        %1397 = vmatprep.mubr.f32.mxu0 0.0
        %1398 = vmatmul.mubr.f32.gmra.mxu0 %v1262
        %v1399 = vpop.f32.mrf.mxu0
        %v1400 = vadd.f32 %v1291, %v1399
        %v1401 = vpop.f32.mrf.mxu0
        %1402 = vmatprep.mubr.f32.mxu0 0.0
        %1403 = vmatmul.mubr.f32.gmra.mxu0 %v1263
        %v1404 = vpop.f32.mrf.mxu0
        %v1405 = vadd.f32 %v1291, %v1404
        %v1406 = vpop.f32.mrf.mxu0
        %1407 = vmatprep.mubr.f32.mxu0 0.0
        %1408 = vmatmul.mubr.f32.gmra.mxu0 %v1264
        %v1409 = vpop.f32.mrf.mxu0
        %v1410 = vadd.f32 %v1291, %v1409
        %v1411 = vpop.f32.mrf.mxu0
        %1412 = vmatprep.mubr.f32.mxu0 0.0
        %1413 = vmatmul.mubr.f32.gmra.mxu0 %v1265
        %v1414 = vpop.f32.mrf.mxu0
        %v1415 = vadd.f32 %v1291, %v1414
        %v1416 = vpop.f32.mrf.mxu0
        %1417 = vmatprep.mubr.f32.mxu0 0.0
        %1418 = vmatmul.mubr.f32.gmra.mxu0 %v1266
        %v1419 = vpop.f32.mrf.mxu0
        %v1420 = vadd.f32 %v1291, %v1419
        %v1421 = vpop.f32.mrf.mxu0
        %1422 = vmatprep.mubr.f32.mxu0 0.0
        %1423 = vmatmul.mubr.f32.gmra.mxu0 %v1267
        %v1424 = vpop.f32.mrf.mxu0
        %v1425 = vadd.f32 %v1291, %v1424
        %v1426 = vpop.f32.mrf.mxu0
        %1427 = vmatprep.mubr.f32.mxu0 0.0
        %1428 = vmatmul.mubr.f32.gmra.mxu0 %v1268
        %v1429 = vpop.f32.mrf.mxu0
        %v1430 = vadd.f32 %v1291, %v1429
        %v1431 = vpop.f32.mrf.mxu0
        %1432 = vmatprep.mubr.f32.mxu0 0.0
        %1433 = vmatmul.mubr.f32.gmra.mxu0 %v1269
        %v1434 = vpop.f32.mrf.mxu0
        %v1435 = vadd.f32 %v1291, %v1434
        %v1436 = vpop.f32.mrf.mxu0
        %1437 = vdwg.mxu0
        %vm1438 = vcmp.gt.f32.partialorder %v1360, 0.0
        %vm1439 = vcmp.gt.f32.partialorder %v1365, 0.0
        %vm1440 = vcmp.gt.f32.partialorder %v1370, 0.0
        %vm1441 = vcmp.gt.f32.partialorder %v1375, 0.0
        %vm1442 = vcmp.gt.f32.partialorder %v1380, 0.0
        %vm1443 = vcmp.gt.f32.partialorder %v1385, 0.0
        %vm1444 = vcmp.gt.f32.partialorder %v1390, 0.0
        %vm1445 = vcmp.gt.f32.partialorder %v1395, 0.0
        %vm1446 = vcmp.gt.f32.partialorder %v1400, 0.0
        %vm1447 = vcmp.gt.f32.partialorder %v1405, 0.0
        %vm1448 = vcmp.gt.f32.partialorder %v1410, 0.0
        %vm1449 = vcmp.gt.f32.partialorder %v1415, 0.0
        %vm1450 = vcmp.gt.f32.partialorder %v1420, 0.0
        %vm1451 = vcmp.gt.f32.partialorder %v1425, 0.0
        %vm1452 = vcmp.gt.f32.partialorder %v1430, 0.0
        %vm1453 = vcmp.gt.f32.partialorder %v1435, 0.0
        %v1454 = vmin.f32 %v1360, 0.0
        %v1455 = vmin.f32 %v1365, 0.0
        %v1456 = vmin.f32 %v1370, 0.0
        %v1457 = vmin.f32 %v1375, 0.0
        %v1458 = vmin.f32 %v1380, 0.0
        %v1459 = vmin.f32 %v1385, 0.0
        %v1460 = vmin.f32 %v1390, 0.0
        %v1461 = vmin.f32 %v1395, 0.0
        %v1462 = vmin.f32 %v1400, 0.0
        %v1463 = vmin.f32 %v1405, 0.0
        %v1464 = vmin.f32 %v1410, 0.0
        %v1465 = vmin.f32 %v1415, 0.0
        %v1466 = vmin.f32 %v1420, 0.0
        %v1467 = vmin.f32 %v1425, 0.0
        %v1468 = vmin.f32 %v1430, 0.0
        %v1469 = vmin.f32 %v1435, 0.0
        %v1470 = vmul.f32 %v1454, 1.442695
        %v1471 = vpow.pop %v1470
        %v1472 = vmul.f32 %v1455, 1.442695
        %v1473 = vpow.pop %v1472
        %v1474 = vmul.f32 %v1456, 1.442695
        %v1475 = vpow.pop %v1474
        %v1476 = vmul.f32 %v1457, 1.442695
        %v1477 = vpow.pop %v1476
        %v1478 = vmul.f32 %v1458, 1.442695
        %v1479 = vpow.pop %v1478
        %v1480 = vmul.f32 %v1459, 1.442695
        %v1481 = vpow.pop %v1480
        %v1482 = vmul.f32 %v1460, 1.442695
        %v1483 = vpow.pop %v1482
        %v1484 = vmul.f32 %v1461, 1.442695
        %v1485 = vpow.pop %v1484
        %v1486 = vmul.f32 %v1462, 1.442695
        %v1487 = vpow.pop %v1486
        %v1488 = vmul.f32 %v1463, 1.442695
        %v1489 = vpow.pop %v1488
        %v1490 = vmul.f32 %v1464, 1.442695
        %v1491 = vpow.pop %v1490
        %v1492 = vmul.f32 %v1465, 1.442695
        %v1493 = vpow.pop %v1492
        %v1494 = vmul.f32 %v1466, 1.442695
        %v1495 = vpow.pop %v1494
        %v1496 = vmul.f32 %v1467, 1.442695
        %v1497 = vpow.pop %v1496
        %v1498 = vmul.f32 %v1468, 1.442695
        %v1499 = vpow.pop %v1498
        %v1500 = vmul.f32 %v1469, 1.442695
        %v1501 = vpow.pop %v1500
        %v1502 = vsub.f32 %v1471, 1.0
        %v1503 = vsub.f32 %v1473, 1.0
        %v1504 = vsub.f32 %v1475, 1.0
        %v1505 = vsub.f32 %v1477, 1.0
        %v1506 = vsub.f32 %v1479, 1.0
        %v1507 = vsub.f32 %v1481, 1.0
        %v1508 = vsub.f32 %v1483, 1.0
        %v1509 = vsub.f32 %v1485, 1.0
        %v1510 = vsub.f32 %v1487, 1.0
        %v1511 = vsub.f32 %v1489, 1.0
        %v1512 = vsub.f32 %v1491, 1.0
        %v1513 = vsub.f32 %v1493, 1.0
        %v1514 = vsub.f32 %v1495, 1.0
        %v1515 = vsub.f32 %v1497, 1.0
        %v1516 = vsub.f32 %v1499, 1.0
        %v1517 = vsub.f32 %v1501, 1.0
        %v1518 = vsel %vm1438, %v1360, %v1502
        %v1519 = vsel %vm1439, %v1365, %v1503
        %v1520 = vsel %vm1440, %v1370, %v1504
        %v1521 = vsel %vm1441, %v1375, %v1505
        %v1522 = vsel %vm1442, %v1380, %v1506
        %v1523 = vsel %vm1443, %v1385, %v1507
        %v1524 = vsel %vm1444, %v1390, %v1508
        %v1525 = vsel %vm1445, %v1395, %v1509
        %v1526 = vsel %vm1446, %v1400, %v1510
        %v1527 = vsel %vm1447, %v1405, %v1511
        %v1528 = vsel %vm1448, %v1410, %v1512
        %v1529 = vsel %vm1449, %v1415, %v1513
        %v1530 = vsel %vm1450, %v1420, %v1514
        %v1531 = vsel %vm1451, %v1425, %v1515
        %v1532 = vsel %vm1452, %v1430, %v1516
        %v1533 = vsel %vm1453, %v1435, %v1517
        %vm1534 = vcmp.gt.f32.partialorder %v1518, 0.0
        %vm1535 = vcmp.gt.f32.partialorder %v1519, 0.0
        %vm1536 = vcmp.gt.f32.partialorder %v1520, 0.0
        %vm1537 = vcmp.gt.f32.partialorder %v1521, 0.0
        %vm1538 = vcmp.gt.f32.partialorder %v1522, 0.0
        %vm1539 = vcmp.gt.f32.partialorder %v1523, 0.0
        %vm1540 = vcmp.gt.f32.partialorder %v1524, 0.0
        %vm1541 = vcmp.gt.f32.partialorder %v1525, 0.0
        %vm1542 = vcmp.gt.f32.partialorder %v1526, 0.0
        %vm1543 = vcmp.gt.f32.partialorder %v1527, 0.0
        %vm1544 = vcmp.gt.f32.partialorder %v1528, 0.0
        %vm1545 = vcmp.gt.f32.partialorder %v1529, 0.0
        %vm1546 = vcmp.gt.f32.partialorder %v1530, 0.0
        %vm1547 = vcmp.gt.f32.partialorder %v1531, 0.0
        %vm1548 = vcmp.gt.f32.partialorder %v1532, 0.0
        %vm1549 = vcmp.gt.f32.partialorder %v1533, 0.0
        %v1550 = vmin.f32 %v1518, 0.0
        %v1551 = vmin.f32 %v1519, 0.0
        %v1552 = vmin.f32 %v1520, 0.0
        %v1553 = vmin.f32 %v1521, 0.0
        %v1554 = vmin.f32 %v1522, 0.0
        %v1555 = vmin.f32 %v1523, 0.0
        %v1556 = vmin.f32 %v1524, 0.0
        %v1557 = vmin.f32 %v1525, 0.0
        %v1558 = vmin.f32 %v1526, 0.0
        %v1559 = vmin.f32 %v1527, 0.0
        %v1560 = vmin.f32 %v1528, 0.0
        %v1561 = vmin.f32 %v1529, 0.0
        %v1562 = vmin.f32 %v1530, 0.0
        %v1563 = vmin.f32 %v1531, 0.0
        %v1564 = vmin.f32 %v1532, 0.0
        %v1565 = vmin.f32 %v1533, 0.0
        %v1566 = vmul.f32 %v1550, 1.442695
        %v1567 = vpow.pop %v1566
        %v1568 = vmul.f32 %v1551, 1.442695
        %v1569 = vpow.pop %v1568
        %v1570 = vmul.f32 %v1552, 1.442695
        %v1571 = vpow.pop %v1570
        %v1572 = vmul.f32 %v1553, 1.442695
        %v1573 = vpow.pop %v1572
        %v1574 = vmul.f32 %v1554, 1.442695
        %v1575 = vpow.pop %v1574
        %v1576 = vmul.f32 %v1555, 1.442695
        %v1577 = vpow.pop %v1576
        %v1578 = vmul.f32 %v1556, 1.442695
        %v1579 = vpow.pop %v1578
        %v1580 = vmul.f32 %v1557, 1.442695
        %v1581 = vpow.pop %v1580
        %v1582 = vmul.f32 %v1558, 1.442695
        %v1583 = vpow.pop %v1582
        %v1584 = vmul.f32 %v1559, 1.442695
        %v1585 = vpow.pop %v1584
        %v1586 = vmul.f32 %v1560, 1.442695
        %v1587 = vpow.pop %v1586
        %v1588 = vmul.f32 %v1561, 1.442695
        %v1589 = vpow.pop %v1588
        %v1590 = vmul.f32 %v1562, 1.442695
        %v1591 = vpow.pop %v1590
        %v1592 = vmul.f32 %v1563, 1.442695
        %v1593 = vpow.pop %v1592
        %v1594 = vmul.f32 %v1564, 1.442695
        %v1595 = vpow.pop %v1594
        %v1596 = vmul.f32 %v1565, 1.442695
        %v1597 = vpow.pop %v1596
        %v1598 = vsub.f32 %v1567, 1.0
        %v1599 = vsub.f32 %v1569, 1.0
        %v1600 = vsub.f32 %v1571, 1.0
        %v1601 = vsub.f32 %v1573, 1.0
        %v1602 = vsub.f32 %v1575, 1.0
        %v1603 = vsub.f32 %v1577, 1.0
        %v1604 = vsub.f32 %v1579, 1.0
        %v1605 = vsub.f32 %v1581, 1.0
        %v1606 = vsub.f32 %v1583, 1.0
        %v1607 = vsub.f32 %v1585, 1.0
        %v1608 = vsub.f32 %v1587, 1.0
        %v1609 = vsub.f32 %v1589, 1.0
        %v1610 = vsub.f32 %v1591, 1.0
        %v1611 = vsub.f32 %v1593, 1.0
        %v1612 = vsub.f32 %v1595, 1.0
        %v1613 = vsub.f32 %v1597, 1.0
        %v1614 = vsel %vm1534, %v1518, %v1598
        %v1615 = vsel %vm1535, %v1519, %v1599
        %v1616 = vsel %vm1536, %v1520, %v1600
        %v1617 = vsel %vm1537, %v1521, %v1601
        %v1618 = vsel %vm1538, %v1522, %v1602
        %v1619 = vsel %vm1539, %v1523, %v1603
        %v1620 = vsel %vm1540, %v1524, %v1604
        %v1621 = vsel %vm1541, %v1525, %v1605
        %v1622 = vsel %vm1542, %v1526, %v1606
        %v1623 = vsel %vm1543, %v1527, %v1607
        %v1624 = vsel %vm1544, %v1528, %v1608
        %v1625 = vsel %vm1545, %v1529, %v1609
        %v1626 = vsel %vm1546, %v1530, %v1610
        %v1627 = vsel %vm1547, %v1531, %v1611
        %v1628 = vsel %vm1548, %v1532, %v1612
        %v1629 = vsel %vm1549, %v1533, %v1613
        %1630 = vst [vmem:[#allocation12] sm:$0xff] %v1614
        %1631 = vst [vmem:[#allocation12 + $0x8] sm:$0xff] %v1615
        %1632 = vst [vmem:[#allocation12 + $0x10] sm:$0xff] %v1616
        %1633 = vst [vmem:[#allocation12 + $0x18] sm:$0xff] %v1617
        %1634 = vst [vmem:[#allocation12 + $0x20] sm:$0xff] %v1618
        %1635 = vst [vmem:[#allocation12 + $0x28] sm:$0xff] %v1619
        %1636 = vst [vmem:[#allocation12 + $0x30] sm:$0xff] %v1620
        %1637 = vst [vmem:[#allocation12 + $0x38] sm:$0xff] %v1621
        %1638 = vst [vmem:[#allocation12 + $0x40] sm:$0xff] %v1622
        %1639 = vst [vmem:[#allocation12 + $0x48] sm:$0xff] %v1623
        %1640 = vst [vmem:[#allocation12 + $0x50] sm:$0xff] %v1624
        %1641 = vst [vmem:[#allocation12 + $0x58] sm:$0xff] %v1625
        %1642 = vst [vmem:[#allocation12 + $0x60] sm:$0xff] %v1626
        %1643 = vst [vmem:[#allocation12 + $0x68] sm:$0xff] %v1627
        %1644 = vst [vmem:[#allocation12 + $0x70] sm:$0xff] %v1628
        %1645 = vst [vmem:[#allocation12 + $0x78] sm:$0xff] %v1629
        // Predicated region
        $region85: #{tpu_custom_call.1} parent=55 // pred_check
          %p1646 = pneg %p256
        $region86: #{tpu_custom_call.1} parent=55 // pred_check_branch
          %1648 = sbr.rel (%p1646) target = $region88
        $region87: #{tpu_custom_call.1} parent=55 // pred_region
          %s1650 = ssub.s32 2048, 2048
          %1651 = vsyncadd [#allocation4], %s1650
          %s1652 = sshll.u32 [#allocation12], 4
          %s1653 = int_to_ptr.vmem [resolvable:$true] %s1652
          %1658 = dma.vmem_to_hbm [thread:$0]  %s1653, 2048, %s9, [#allocation4], 128, 128, 8
        $region88: #{tpu_custom_call.1} parent=55 // pred_fallthru
          _
        // Predicated region
        $region89: #{tpu_custom_call.1} parent=55 // pred_check
          %p1659 = pneg %p256
        $region90: #{tpu_custom_call.1} parent=55 // pred_check_branch
          %1661 = sbr.rel (%p1659) target = $region92
        $region91: #{tpu_custom_call.1} parent=55 // pred_region
          %1662 = dma.done [#allocation4], 2048
        $region92: #{tpu_custom_call.1} parent=55 // pred_fallthru
          _
      $region56: #{tpu_custom_call.1} parent=5 // pred_fallthru
        _
      %p1663 = scmp.le.s32.totalorder 2, %s19
      // Predicated region
      $region93: #{tpu_custom_call.1} parent=5 // pred_check
        %p1664 = pneg %p1663
      $region94: #{tpu_custom_call.1} parent=5 // pred_check_branch
        %1666 = sbr.rel (%p1664) target = $region96
      $region95: #{tpu_custom_call.1} parent=5 // pred_region
        %s1667 = ssub.s32 %s19, 2
      $region96: #{tpu_custom_call.1} parent=5 // pred_fallthru
        _
    $region6: #{tpu_custom_call.1} parent=1 // loop_footer
      %s23 = sadd.s32 1, %s19
    $region7: #{tpu_custom_call.1} parent=1 // loop_footer_branch
      %18 = sbr.rel target = $region3
    $region8: #{tpu_custom_call.1} parent=1 // loop_exit
      _
    %1668 = vsyncpa [#allocation3], 1
    %s1669 = scalar_lea.sflag [#allocation3], 1
    %1670 = vsyncpa %s1669, 1
    %1671 = vsyncpa [#allocation8], 1
    %1672 = vsyncpa [#allocation4], 1
    %s1673 = scalar_lea.sflag [#allocation4], 1
    %1674 = vsyncpa %s1673, 1
    %1675 = vsyncpa [#allocation5], 1
    %s1676 = scalar_lea.sflag [#allocation5], 1
    %1677 = vsyncpa %s1676, 1

</llo_original>
